<compile_context>
chip_gen: v6e
topology: v6e:2x2x1
jax: 0.10.0
libtpu: 0.0.40
codegen_flags: <defaults>
</compile_context>

<pallas_src>
import functools

import jax
import jax.numpy as jnp
from jax.experimental import pallas as pl
from jax.experimental.pallas import tpu as pltpu


def _round_up(v: int, m: int) -> int:
    return (v + m - 1) // m * m


def _cdiv(a: int, b: int) -> int:
    return -(-a // b)


def _vmem_capacity_bytes() -> int:
    """Physical VMEM of the local TPU; conservative fallback if unavailable."""
    try:
        info = pltpu.get_tpu_info()
        cap = getattr(info, "vmem_capacity_bytes", None)
        if cap:
            return int(cap)
    except Exception:
        pass
    return 64 * 1024 * 1024  # conservative: v7x per-TC VMEM


def _linear_kernel(x_ref, w_ref, b_ref, o_ref):
    """One (TM, TN) output tile; accumulates in-place over the K grid axis.

    x_ref: (TM, TK)  activations tile
    w_ref: (TK, TN)  pre-transposed weight tile (no in-kernel transpose)
    b_ref: (1,  TN)  bias tile (resident across i and k)
    o_ref: (TM, TN)  f32 output tile, resident across k -> doubles as acc
    """
    k = pl.program_id(2)

    @pl.when(k == 0)
    def _init():
        o_ref[...] = jnp.zeros_like(o_ref)

    o_ref[...] += jnp.dot(x_ref[...], w_ref[...],
                          preferred_element_type=jnp.float32)

    @pl.when(k == pl.num_programs(2) - 1)
    def _add_bias():
        o_ref[...] += b_ref[...]


def make_concrete_linear(weight, bias):
    """Builds a jitted forward for ConcreteLinear: y = x @ weight.T + bias.

    weight: (out_features, in_features) f32  (PyTorch convention)
    bias:   (out_features,)             f32
    Returns forward(x: (B, in_features)) -> (B, out_features).

    Weight/bias padding + transpose is paid once here, not per call.
    """
    N, K = weight.shape
    assert bias.shape == (N,), "bias/out_features mismatch"

    vmem_cap = _vmem_capacity_bytes()
    if vmem_cap <= 80 * 1024 * 1024:        # v7x: 64 MiB physical per TC
        TM_CAP, TN_CAP, TK_CAP = 512, 512, 1024
        vmem_ceiling = 48 * 1024 * 1024
    else:                                    # v5e / v6e: 128 MiB
        TM_CAP, TN_CAP, TK_CAP = 512, 512, 2048
        vmem_ceiling = 96 * 1024 * 1024

    Na = _round_up(N, 128)
    Ka = _round_up(K, 128)
    TN = min(TN_CAP, Na)
    TK = min(TK_CAP, Ka)          # prefer full K -> fewest K grid steps
    Np = _round_up(Na, TN)
    Kp = _round_up(Ka, TK)

    # One-time static-parameter prep: zero-pad, transpose to (Kp, Np).
    w_t = jnp.pad(weight.astype(jnp.float32),
                  ((0, Np - N), (0, Kp - K))).T          # (Kp, Np)
    b_p = jnp.pad(bias.astype(jnp.float32),
                  (0, Np - N)).reshape(1, Np)            # (1, Np)

    @jax.jit
    def _forward(x, w_t, b_p):
        B, Kx = x.shape
        assert Kx == K, "in_features mismatch"
        x = x.astype(jnp.float32)

        Ma = _round_up(B, 8)
        TM = min(TM_CAP, Ma)
        # v7x has 2 TensorCores sharded over the "parallel" grid axes; if the
        # (i, j) grid would be a single tile, split M so both cores get work.
        if _cdiv(Ma, TM) == 1 and Np // TN == 1 and Ma >= 16:
            TM = _round_up(_cdiv(Ma, 2), 8)
        Mp = _round_up(Ma, TM)

        xp = x if (Mp == B and Kp == K) else jnp.pad(
            x, ((0, Mp - B), (0, Kp - K)))

        grid = (Mp // TM, Np // TN, Kp // TK)

        # Double-buffered x / w / bias input blocks + double-buffered output.
        vmem_bytes = 4 * (2 * (TM * TK + TK * TN + TN) + 2 * TM * TN)
        vmem_limit = int(min(max(2 * vmem_bytes, 32 * 1024 * 1024),
                             vmem_ceiling))

        cost = pl.CostEstimate(
            flops=2 * Mp * Np * Kp,
            transcendentals=0,
            # x is re-streamed once per N tile, w once per M tile.
            bytes_accessed=4 * (Mp * Kp * (Np // TN)
                                + Kp * Np * (Mp // TM)
                                + Mp * Np
                                + Np * (Mp // TM)),
        )

        out = pl.pallas_call(
            _linear_kernel,
            out_shape=jax.ShapeDtypeStruct((Mp, Np), jnp.float32),
            grid_spec=pltpu.PrefetchScalarGridSpec(
                num_scalar_prefetch=0,
                grid=grid,
                in_specs=[
                    pl.BlockSpec((TM, TK), lambda i, j, k: (i, k)),  # x
                    pl.BlockSpec((TK, TN), lambda i, j, k: (k, j)),  # W^T
                    pl.BlockSpec((1, TN), lambda i, j, k: (0, j)),   # bias
                ],
                out_specs=pl.BlockSpec((TM, TN), lambda i, j, k: (i, j)),
            ),
            compiler_params=pltpu.CompilerParams(
                dimension_semantics=("parallel", "parallel", "arbitrary"),
                vmem_limit_bytes=vmem_limit,
            ),
            cost_estimate=cost,
        )(xp, w_t, b_p)

        if Mp != B or Np != N:
            out = out[:B, :N]
        return out

    def forward(x):
        return _forward(x, w_t, b_p)

    return forward


if __name__ == "__main__":
    key = jax.random.PRNGKey(0)

    # --- Test 1: tile-exercising shapes (multiple M tiles, full-K dot). ----
    B, in_f, out_f = 256, 1024, 512
    k1, k2, k3, key = jax.random.split(key, 4)
    x = jax.random.normal(k1, (B, in_f), dtype=jnp.float32)
    weight = jax.random.normal(k2, (out_f, in_f), dtype=jnp.float32) * 0.05
    bias = jax.random.normal(k3, (out_f,), dtype=jnp.float32) * 0.1

    linear1 = make_concrete_linear(weight, bias)
    y = jax.block_until_ready(linear1(x))
    y_ref = x @ weight.T + bias
    assert y.shape == (B, out_f)
    assert jnp.allclose(y, y_ref, atol=1e-3, rtol=1e-4), "test 1 mismatch"

    # --- Test 2: small ragged shapes (exercises the padding path). ---------
    B2, in2, out2 = 8, 32, 16
    k4, k5, k6, _ = jax.random.split(key, 4)
    x2 = jax.random.normal(k4, (B2, in2), dtype=jnp.float32)
    w2 = jax.random.normal(k5, (out2, in2), dtype=jnp.float32) * 0.1
    b2 = jax.random.normal(k6, (out2,), dtype=jnp.float32) * 0.1

    linear2 = make_concrete_linear(w2, b2)
    y2 = jax.block_until_ready(linear2(x2))
    y2_ref = x2 @ w2.T + b2
    assert y2.shape == (B2, out2)
    assert jnp.allclose(y2, y2_ref, atol=1e-5, rtol=1e-5), "test 2 mismatch"

    print("KERNEL_OK")
</pallas_src>

<mosaic_0001>
module attributes {stable_mosaic.version = 11 : i64} {
  func.func @_linear_kernel(%arg0: i32, %arg1: i32, %arg2: i32, %arg3: memref<128x1024xf32, #tpu.memory_space<vmem>>, %arg4: memref<1024x512xf32, #tpu.memory_space<vmem>>, %arg5: memref<1x512xf32, #tpu.memory_space<vmem>>, %arg6: memref<128x512xf32, #tpu.memory_space<vmem>>) attributes {dimension_semantics = [#tpu.dimension_semantics<parallel>, #tpu.dimension_semantics<parallel>, #tpu.dimension_semantics<arbitrary>], iteration_bounds = array<i64: 2, 1, 1>, scalar_prefetch = 0 : i64, scratch_operands = 0 : i64, tpu.core_type = #tpu.core_type<tc>, window_params = [{transform_indices = @transform_0, window_bounds = array<i64: 128, 1024>}, {transform_indices = @transform_1, window_bounds = array<i64: 1024, 512>}, {transform_indices = @transform_2, window_bounds = array<i64: 1, 512>}, {transform_indices = @transform_3, window_bounds = array<i64: 128, 512>}]} {
    %c0_i32 = arith.constant 0 : i32
    %0 = arith.cmpi eq, %arg2, %c0_i32 : i32
    %1 = arith.extui %0 : i1 to i32
    %c0_i32_0 = arith.constant 0 : i32
    %2 = arith.cmpi ne, %1, %c0_i32_0 : i32
    scf.if %2 {
      %cst_10 = arith.constant 0.000000e+00 : f32
      %12 = vector.broadcast %cst_10 : f32 to vector<128x512xf32>
      %c0_11 = arith.constant 0 : index
      %c0_12 = arith.constant 0 : index
      %13 = vector.load %arg6[%c0_11, %c0_12] : memref<128x512xf32, #tpu.memory_space<vmem>>, vector<128x512xf32>
      tpu.vector_store %arg6[%c0_11, %c0_12], %12 {strides = array<i32>} : memref<128x512xf32, #tpu.memory_space<vmem>>, vector<128x512xf32>,
    } else {
    }
    %c0 = arith.constant 0 : index
    %c0_1 = arith.constant 0 : index
    %3 = vector.load %arg6[%c0, %c0_1] : memref<128x512xf32, #tpu.memory_space<vmem>>, vector<128x512xf32>
    %c0_2 = arith.constant 0 : index
    %c0_3 = arith.constant 0 : index
    %4 = vector.load %arg3[%c0_2, %c0_3] : memref<128x1024xf32, #tpu.memory_space<vmem>>, vector<128x1024xf32>
    %c0_4 = arith.constant 0 : index
    %c0_5 = arith.constant 0 : index
    %5 = vector.load %arg4[%c0_4, %c0_5] : memref<1024x512xf32, #tpu.memory_space<vmem>>, vector<1024x512xf32>
    %cst = arith.constant dense<0.000000e+00> : vector<128x512xf32>
    %6 = tpu.matmul %4, %5, %cst {dimension_numbers = #tpu.dot_dimension_numbers<[1], [0], [0], [1], [0, 0, 1, 1], [], []>} : vector<128x1024xf32>, vector<1024x512xf32>, vector<128x512xf32> -> vector<128x512xf32>
    %7 = arith.addf %3, %6 : vector<128x512xf32>
    %c0_6 = arith.constant 0 : index
    %c0_7 = arith.constant 0 : index
    %8 = vector.load %arg6[%c0_6, %c0_7] : memref<128x512xf32, #tpu.memory_space<vmem>>, vector<128x512xf32>
    tpu.vector_store %arg6[%c0_6, %c0_7], %7 {strides = array<i32>} : memref<128x512xf32, #tpu.memory_space<vmem>>, vector<128x512xf32>,
    %c0_i32_8 = arith.constant 0 : i32
    %9 = arith.cmpi eq, %arg2, %c0_i32_8 : i32
    %10 = arith.extui %9 : i1 to i32
    %c0_i32_9 = arith.constant 0 : i32
    %11 = arith.cmpi ne, %10, %c0_i32_9 : i32
    scf.if %11 {
      %c0_10 = arith.constant 0 : index
      %c0_11 = arith.constant 0 : index
      %12 = vector.load %arg6[%c0_10, %c0_11] : memref<128x512xf32, #tpu.memory_space<vmem>>, vector<128x512xf32>
      %c0_12 = arith.constant 0 : index
      %c0_13 = arith.constant 0 : index
      %13 = vector.load %arg5[%c0_12, %c0_13] : memref<1x512xf32, #tpu.memory_space<vmem>>, vector<1x512xf32>
      %14 = vector.broadcast %13 : vector<1x512xf32> to vector<128x512xf32>
      %15 = arith.addf %12, %14 : vector<128x512xf32>
      %c0_14 = arith.constant 0 : index
      %c0_15 = arith.constant 0 : index
      %16 = vector.load %arg6[%c0_14, %c0_15] : memref<128x512xf32, #tpu.memory_space<vmem>>, vector<128x512xf32>
      tpu.vector_store %arg6[%c0_14, %c0_15], %15 {strides = array<i32>} : memref<128x512xf32, #tpu.memory_space<vmem>>, vector<128x512xf32>,
    } else {
    }
    return
  }
  func.func @transform_0(%arg0: i32, %arg1: i32, %arg2: i32) -> (i32, i32) {
    %c0_i32 = arith.constant 0 : i32
    return %arg0, %arg2 : i32, i32
  }
  func.func @transform_1(%arg0: i32, %arg1: i32, %arg2: i32) -> (i32, i32) {
    %c0_i32 = arith.constant 0 : i32
    return %arg2, %arg1 : i32, i32
  }
  func.func @transform_2(%arg0: i32, %arg1: i32, %arg2: i32) -> (i32, i32) {
    %c0_i32 = arith.constant 0 : i32
    %c0_i32_0 = arith.constant 0 : i32
    return %c0_i32, %arg1 : i32, i32
  }
  func.func @transform_3(%arg0: i32, %arg1: i32, %arg2: i32) -> (i32, i32) {
    %c0_i32 = arith.constant 0 : i32
    return %arg0, %arg1 : i32, i32
  }
}

</mosaic_0001>

<llo_original>
// kernel: _forward.1
$region0: #{_forward.1}
  #allocation0 [shape = 'u32[]', space=smem, size = 0x4, offset = 0x4, fixed_abs, tag = 'smem constant byte address 0x4 - core index']
  #allocation1 [shape = 'u32[144,128]{1,0:T(1,128)}', space=vmem, size = 0x12000, scoped, tag = 'internal scratch']
  %s0 = inlined_call_operand.hbm [shape: f32[256,1024], index: 0, kind: input, shape index: {}]
  %s1 = inlined_call_operand.hbm [shape: f32[1024,512], index: 1, kind: input, shape index: {}]
  %s2 = inlined_call_operand.hbm [shape: f32[1,512], index: 2, kind: input, shape index: {}]
  %s3 = inlined_call_operand.hbm [shape: f32[256,512], index: 3, kind: output, shape index: {}]
  %s4 = sld [smem:[#allocation0]]
  $region65: #{_forward.1} parent=0
    _
  %s6 = ssub.s32 1, %s4
  %s7 = scalar_select 0, %s6, %s4
  $region1: #{_forward.1} parent=0
    #allocation2 [shape = 'u8[1048576]{0}', space=vmem, size = 0x100000, scoped, tag = 'input window, operand 0']
    #allocation3 [shape = 's32[2]{0}', space=sflag, size = 0x8, scoped, tag = 'scoped memory for _forward.1']
    #allocation4 [shape = 's32[2]{0}', space=sflag, size = 0x8, scoped, tag = 'scoped memory for _forward.1']
    #allocation5 [shape = 'u8[2097152]{0}', space=vmem, size = 0x200000, scoped, tag = 'input window, operand 1, single buffered']
    #allocation6 [shape = 's32[1]{0}', space=sflag, size = 0x4, scoped, tag = 'scoped memory for _forward.1']
    #allocation7 [shape = 'u8[2048]{0}', space=vmem, size = 0x800, scoped, tag = 'input window, operand 2, single buffered']
    #allocation8 [shape = 'u8[524288]{0}', space=vmem, size = 0x80000, scoped, tag = 'output window, operand 0']
    %8 = vsyncpa [#allocation3], 0
    %s9 = scalar_lea.sflag [#allocation3], 1
    %10 = vsyncpa %s9, 0
    %11 = vsyncpa [#allocation6], 0
    %12 = vsyncpa [#allocation4], 0
    %s13 = scalar_lea.sflag [#allocation4], 1
    %14 = vsyncpa %s13, 0
    loop: start=0, step=1, limit=4
    $region2: #{_forward.1} parent=1 // loop_pre_header
      _
    $region3: #{_forward.1} parent=1 // loop_header
      %s16 = sphi 0, %s20
      %p17 = scmp.ge.s32.totalorder %s16, 4
      %s23 = sphi 0, %s42
      %s24 = sphi 0, %s38
      %s25 = sphi 0, %s34
      %s26 = sphi 0, %s23
      %s27 = sphi 0, %s24
      %s28 = sphi 0, %s25
      %s29 = sphi 0, %s26
      %s30 = sphi 0, %s27
      %s31 = sphi 0, %s28
      %s47 = sphi 0, %s49
      %s50 = sphi 0, %s47
      %s51 = sphi 0, %s50
      %s67 = sphi 0, %s51
      %s75 = sphi 0, %s77
      %s78 = sphi 0, %s75
      %s79 = sphi 0, %s78
      %s95 = sphi 0, %s79
      %s101 = sphi 0, %s103
      %s104 = sphi 0, %s101
      %s105 = sphi 0, %s104
      %s121 = sphi 0, %s105
      %s129 = sphi 0, %s131
      %s132 = sphi 0, %s129
      %s133 = sphi 0, %s132
      %s149 = sphi 0, %s133
    $region4: #{_forward.1} parent=1 // loop_header_branch
      %19 = sbr.rel (%p17) target = $region8
    $region5: #{_forward.1} parent=1 // loop_body
      %s21 = ssub.s32 %s16, 1
      %s22 = ssub.s32 %s16, 2
      %s32 = sadd.s32 1, %s25
      %p33 = scmp.ge.s32.totalorder %s32, 1
      %s34 = scalar_select %p33, 0, %s32
      %s35 = sadd.s32 1, %s24
      %s36 = scalar_select %p33, %s35, %s24
      %p37 = scmp.ge.s32.totalorder %s36, 1
      %s38 = scalar_select %p37, 0, %s36
      %s39 = sadd.s32 1, %s23
      %s40 = scalar_select %p37, %s39, %s23
      %p41 = scmp.ge.s32.totalorder %s40, 2
      %s42 = scalar_select %p41, 0, %s40
      %s43 = ssub.s32 %s23, %s42
      %s44 = ssub.s32 %s25, %s34
      %s45 = sor.u32 %s43, %s44
      %p46 = scmp.eq.s32.totalorder %s45, 0
      %s48 = sadd.s32 %s47, 1
      %s49 = scalar_select %p46, %s47, %s48
      %p52 = pneg %p46
      %p53 = scmp.eq.s32.totalorder %s16, 1
      %p54 = por %p52, %p53
      %p55 = scmp.ne.s32.totalorder %s47, %s50
      %p56 = scmp.eq.s32.totalorder %s16, 0
      %p57 = por %p55, %p56
      %p58 = scmp.ne.s32.totalorder %s47, %s50
      %p59 = scmp.eq.s32.totalorder %s21, 1
      %p60 = por %p58, %p59
      %p61 = scmp.ne.s32.totalorder %s50, %s51
      %p62 = scmp.eq.s32.totalorder %s21, 0
      %p63 = por %p61, %p62
      %p64 = scmp.ne.s32.totalorder %s50, %s51
      %p65 = scmp.eq.s32.totalorder %s22, 1
      %p66 = por %p64, %p65
      %p68 = scmp.ne.s32.totalorder %s51, %s67
      %p69 = scmp.eq.s32.totalorder %s22, 0
      %p70 = por %p68, %p69
      %s71 = ssub.s32 %s25, %s34
      %s72 = ssub.s32 %s24, %s38
      %s73 = sor.u32 %s71, %s72
      %p74 = scmp.eq.s32.totalorder %s73, 0
      %s76 = sadd.s32 %s75, 1
      %s77 = scalar_select %p74, %s75, %s76
      %p80 = pneg %p74
      %p81 = scmp.eq.s32.totalorder %s16, 1
      %p82 = por %p80, %p81
      %p83 = scmp.ne.s32.totalorder %s75, %s78
      %p84 = scmp.eq.s32.totalorder %s16, 0
      %p85 = por %p83, %p84
      %p86 = scmp.ne.s32.totalorder %s75, %s78
      %p87 = scmp.eq.s32.totalorder %s21, 1
      %p88 = por %p86, %p87
      %p89 = scmp.ne.s32.totalorder %s78, %s79
      %p90 = scmp.eq.s32.totalorder %s21, 0
      %p91 = por %p89, %p90
      %p92 = scmp.ne.s32.totalorder %s78, %s79
      %p93 = scmp.eq.s32.totalorder %s22, 1
      %p94 = por %p92, %p93
      %p96 = scmp.ne.s32.totalorder %s79, %s95
      %p97 = scmp.eq.s32.totalorder %s22, 0
      %p98 = por %p96, %p97
      %s99 = ssub.s32 %s24, %s38
      %p100 = scmp.eq.s32.totalorder %s99, 0
      %s102 = sadd.s32 %s101, 1
      %s103 = scalar_select %p100, %s101, %s102
      %p106 = pneg %p100
      %p107 = scmp.eq.s32.totalorder %s16, 1
      %p108 = por %p106, %p107
      %p109 = scmp.ne.s32.totalorder %s101, %s104
      %p110 = scmp.eq.s32.totalorder %s16, 0
      %p111 = por %p109, %p110
      %p112 = scmp.ne.s32.totalorder %s101, %s104
      %p113 = scmp.eq.s32.totalorder %s21, 1
      %p114 = por %p112, %p113
      %p115 = scmp.ne.s32.totalorder %s104, %s105
      %p116 = scmp.eq.s32.totalorder %s21, 0
      %p117 = por %p115, %p116
      %p118 = scmp.ne.s32.totalorder %s104, %s105
      %p119 = scmp.eq.s32.totalorder %s22, 1
      %p120 = por %p118, %p119
      %p122 = scmp.ne.s32.totalorder %s105, %s121
      %p123 = scmp.eq.s32.totalorder %s22, 0
      %p124 = por %p122, %p123
      %s125 = ssub.s32 %s23, %s42
      %s126 = ssub.s32 %s24, %s38
      %s127 = sor.u32 %s125, %s126
      %p128 = scmp.eq.s32.totalorder %s127, 0
      %s130 = sadd.s32 %s129, 1
      %s131 = scalar_select %p128, %s129, %s130
      %p134 = pneg %p128
      %p135 = scmp.eq.s32.totalorder %s16, 1
      %p136 = por %p134, %p135
      %p137 = scmp.ne.s32.totalorder %s129, %s132
      %p138 = scmp.eq.s32.totalorder %s16, 0
      %p139 = por %p137, %p138
      %p140 = scmp.ne.s32.totalorder %s129, %s132
      %p141 = scmp.eq.s32.totalorder %s21, 1
      %p142 = por %p140, %p141
      %p143 = scmp.ne.s32.totalorder %s132, %s133
      %p144 = scmp.eq.s32.totalorder %s21, 0
      %p145 = por %p143, %p144
      %p146 = scmp.ne.s32.totalorder %s132, %s133
      %p147 = scmp.eq.s32.totalorder %s22, 1
      %p148 = por %p146, %p147
      %p150 = scmp.ne.s32.totalorder %s133, %s149
      %p151 = scmp.eq.s32.totalorder %s22, 0
      %p152 = por %p150, %p151
      %p153 = scmp.le.s32.totalorder 1, %s16
      %p154 = scmp.lt.s32.totalorder %s16, 3
      %p155 = pnand %p153, %p154
      %p156 = pneg %p155
      // Predicated region
      $region9: #{_forward.1} parent=5 // pred_check
        _
      $region10: #{_forward.1} parent=5 // pred_check_branch
        %158 = sbr.rel (%p155) target = $region12
      $region11: #{_forward.1} parent=5 // pred_region
        %s159 = ssub.s32 %s16, 1
        // Predicated region
        $region13: #{_forward.1} parent=11 // pred_check
          %p160 = pneg %p91
        $region14: #{_forward.1} parent=11 // pred_check_branch
          %162 = sbr.rel (%p160) target = $region16
        $region15: #{_forward.1} parent=11 // pred_region
          %s163 = smul.u32 128, %s28
          %s164 = smul.u32 4, %s27
          %s166 = ssub.s32 65536, 65536
          %167 = vsyncadd [#allocation6], %s166
          %s168 = smul.addr %s163, 4
          %s169 = sadd.s32 %s164, %s168
          %s170 = smul.addr %s169, 128
          %s171 = scalar_lea.hbm %s1, %s170
          %s172 = sshll.u32 [#allocation5], 4
          %s173 = int_to_ptr.vmem [resolvable:$true] %s172
          %178 = dma.hbm_to_vmem [thread:$0]  %s171, 65536, %s173, [#allocation6], 512, 512, 32
        $region16: #{_forward.1} parent=11 // pred_fallthru
          _
        // Predicated region
        $region17: #{_forward.1} parent=11 // pred_check
          %p179 = pneg %p117
        $region18: #{_forward.1} parent=11 // pred_check_branch
          %181 = sbr.rel (%p179) target = $region20
        $region19: #{_forward.1} parent=11 // pred_region
          %s182 = smul.u32 4, %s27
          %s184 = ssub.s32 64, 64
          %185 = vsyncadd [#allocation6], %s184
          %s186 = smul.addr %s182, 16
          %s187 = scalar_lea.hbm %s2, %s186
          %s189 = sshll.u32 [#allocation7], 4
          %s190 = int_to_ptr.vmem [resolvable:$true] %s189
          %192 = dma.hbm_to_vmem [thread:$0]  %s187, 64, %s190, [#allocation6]
        $region20: #{_forward.1} parent=11 // pred_fallthru
          _
      $region12: #{_forward.1} parent=5 // pred_fallthru
        _
      %p193 = scmp.lt.s32.totalorder %s16, 2
      // Predicated region
      $region21: #{_forward.1} parent=5 // pred_check
        %p194 = pneg %p193
      $region22: #{_forward.1} parent=5 // pred_check_branch
        %196 = sbr.rel (%p194) target = $region24
      $region23: #{_forward.1} parent=5 // pred_region
        // Predicated region
        $region25: #{_forward.1} parent=23 // pred_check
          %p197 = pneg %p57
        $region26: #{_forward.1} parent=23 // pred_check_branch
          %199 = sbr.rel (%p197) target = $region28
        $region27: #{_forward.1} parent=23 // pred_region
          %s200 = sand.u32 %s47, 1
          %s201 = scalar_lea.sflag [#allocation3], %s200
          %s202 = sand.u32 %s47, 1
          %s203 = smul.addr %s202, 1024
          %s204 = scalar_lea.vmem [#allocation2], %s203
          %s205 = smul.u32 16, %s23
          %s206 = smul.u32 8, %s25
          %s208 = ssub.s32 16384, 16384
          %209 = vsyncadd %s201, %s208
          %s210 = smul.addr %s205, 8
          %s211 = sadd.s32 %s206, %s210
          %s212 = smul.addr %s211, 128
          %s213 = scalar_lea.hbm %s0, %s212
          %s214 = sshll.u32 %s204, 4
          %s215 = int_to_ptr.vmem [resolvable:$true] %s214
          %220 = dma.hbm_to_vmem [thread:$0]  %s213, 16384, %s215, %s201, 1024, 1024, 64
        $region28: #{_forward.1} parent=23 // pred_fallthru
          _
      $region24: #{_forward.1} parent=5 // pred_fallthru
        _
      %p221 = scmp.le.s32.totalorder 1, %s16
      %p222 = scmp.lt.s32.totalorder %s16, 3
      %p223 = pnand %p221, %p222
      %p224 = pneg %p223
      // Predicated region
      $region29: #{_forward.1} parent=5 // pred_check
        _
      $region30: #{_forward.1} parent=5 // pred_check_branch
        %226 = sbr.rel (%p223) target = $region32
      $region31: #{_forward.1} parent=5 // pred_region
        %s227 = ssub.s32 %s16, 1
        %s228 = sand.u32 %s50, 1
        %s229 = scalar_lea.sflag [#allocation3], %s228
        %s230 = sand.u32 %s50, 1
        %s231 = smul.addr %s230, 1024
        %s232 = scalar_lea.vmem [#allocation2], %s231
        // Predicated region
        $region33: #{_forward.1} parent=31 // pred_check
          %p233 = pneg %p63
        $region34: #{_forward.1} parent=31 // pred_check_branch
          %235 = sbr.rel (%p233) target = $region36
        $region35: #{_forward.1} parent=31 // pred_region
          %236 = dma.done %s229, 16384
        $region36: #{_forward.1} parent=31 // pred_fallthru
          _
        // Predicated region
        $region37: #{_forward.1} parent=31 // pred_check
          %p237 = pneg %p91
        $region38: #{_forward.1} parent=31 // pred_check_branch
          %239 = sbr.rel (%p237) target = $region40
        $region39: #{_forward.1} parent=31 // pred_region
          %240 = dma.done [#allocation6], 65536
        $region40: #{_forward.1} parent=31 // pred_fallthru
          _
        // Predicated region
        $region41: #{_forward.1} parent=31 // pred_check
          %p241 = pneg %p117
        $region42: #{_forward.1} parent=31 // pred_check_branch
          %243 = sbr.rel (%p241) target = $region44
        $region43: #{_forward.1} parent=31 // pred_region
          %244 = dma.done [#allocation6], 64
        $region44: #{_forward.1} parent=31 // pred_fallthru
          _
        %s245 = sand.u32 %s50, 1
        %s246 = scalar_lea.sflag [#allocation3], %s245
        %s247 = sand.u32 %s50, 1
        %s248 = smul.addr %s247, 1024
        %s249 = scalar_lea.vmem [#allocation2], %s248
        %p250 = pneg %p63
        %p251 = pneg %p60
        %p252 = pneg %p91
        %p253 = pneg %p88
        %p254 = pneg %p117
        %p255 = pneg %p114
        %p256 = pneg %p145
        %p257 = pneg %p142
        %s258 = sand.u32 %s132, 1
        %s259 = scalar_lea.sflag [#allocation4], %s258
        %s260 = sand.u32 %s132, 1
        %s261 = smul.addr %s260, 512
        %s262 = scalar_lea.vmem [#allocation8], %s261
        %s263 = smul.u32 16, %s26
        %s264 = smul.u32 8, %s28
        %s265 = smul.u32 128, %s28
        %s266 = smul.u32 4, %s27
        %s267 = smul.u32 4, %s27
        %s268 = smul.u32 16, %s26
        %s269 = smul.u32 4, %s27
        %p270 = scmp.eq.s32.totalorder %s28, 0
        // Predicated region
        $region45: #{_forward.1} parent=31 // pred_check
          %p271 = pneg %p270
        $region46: #{_forward.1} parent=31 // pred_check_branch
          %273 = sbr.rel (%p271) target = $region48
        $region47: #{_forward.1} parent=31 // pred_region
          %274 = vst [vmem:[%s262] sm:$0xff] 0.0
          %275 = vst [vmem:[%s262 + $0x8] sm:$0xff] 0.0
          %276 = vst [vmem:[%s262 + $0x10] sm:$0xff] 0.0
          %277 = vst [vmem:[%s262 + $0x18] sm:$0xff] 0.0
          %278 = vst [vmem:[%s262 + $0x20] sm:$0xff] 0.0
          %279 = vst [vmem:[%s262 + $0x28] sm:$0xff] 0.0
          %280 = vst [vmem:[%s262 + $0x30] sm:$0xff] 0.0
          %281 = vst [vmem:[%s262 + $0x38] sm:$0xff] 0.0
          %282 = vst [vmem:[%s262 + $0x40] sm:$0xff] 0.0
          %283 = vst [vmem:[%s262 + $0x48] sm:$0xff] 0.0
          %284 = vst [vmem:[%s262 + $0x50] sm:$0xff] 0.0
          %285 = vst [vmem:[%s262 + $0x58] sm:$0xff] 0.0
          %286 = vst [vmem:[%s262 + $0x60] sm:$0xff] 0.0
          %287 = vst [vmem:[%s262 + $0x68] sm:$0xff] 0.0
          %288 = vst [vmem:[%s262 + $0x70] sm:$0xff] 0.0
          %289 = vst [vmem:[%s262 + $0x78] sm:$0xff] 0.0
          %290 = vst [vmem:[%s262 + $0x80] sm:$0xff] 0.0
          %291 = vst [vmem:[%s262 + $0x88] sm:$0xff] 0.0
          %292 = vst [vmem:[%s262 + $0x90] sm:$0xff] 0.0
          %293 = vst [vmem:[%s262 + $0x98] sm:$0xff] 0.0
          %294 = vst [vmem:[%s262 + $0xa0] sm:$0xff] 0.0
          %295 = vst [vmem:[%s262 + $0xa8] sm:$0xff] 0.0
          %296 = vst [vmem:[%s262 + $0xb0] sm:$0xff] 0.0
          %297 = vst [vmem:[%s262 + $0xb8] sm:$0xff] 0.0
          %298 = vst [vmem:[%s262 + $0xc0] sm:$0xff] 0.0
          %299 = vst [vmem:[%s262 + $0xc8] sm:$0xff] 0.0
          %300 = vst [vmem:[%s262 + $0xd0] sm:$0xff] 0.0
          %301 = vst [vmem:[%s262 + $0xd8] sm:$0xff] 0.0
          %302 = vst [vmem:[%s262 + $0xe0] sm:$0xff] 0.0
          %303 = vst [vmem:[%s262 + $0xe8] sm:$0xff] 0.0
          %304 = vst [vmem:[%s262 + $0xf0] sm:$0xff] 0.0
          %305 = vst [vmem:[%s262 + $0xf8] sm:$0xff] 0.0
          %306 = vst [vmem:[%s262 + $0x100] sm:$0xff] 0.0
          %307 = vst [vmem:[%s262 + $0x108] sm:$0xff] 0.0
          %308 = vst [vmem:[%s262 + $0x110] sm:$0xff] 0.0
          %309 = vst [vmem:[%s262 + $0x118] sm:$0xff] 0.0
          %310 = vst [vmem:[%s262 + $0x120] sm:$0xff] 0.0
          %311 = vst [vmem:[%s262 + $0x128] sm:$0xff] 0.0
          %312 = vst [vmem:[%s262 + $0x130] sm:$0xff] 0.0
          %313 = vst [vmem:[%s262 + $0x138] sm:$0xff] 0.0
          %314 = vst [vmem:[%s262 + $0x140] sm:$0xff] 0.0
          %315 = vst [vmem:[%s262 + $0x148] sm:$0xff] 0.0
          %316 = vst [vmem:[%s262 + $0x150] sm:$0xff] 0.0
          %317 = vst [vmem:[%s262 + $0x158] sm:$0xff] 0.0
          %318 = vst [vmem:[%s262 + $0x160] sm:$0xff] 0.0
          %319 = vst [vmem:[%s262 + $0x168] sm:$0xff] 0.0
          %320 = vst [vmem:[%s262 + $0x170] sm:$0xff] 0.0
          %321 = vst [vmem:[%s262 + $0x178] sm:$0xff] 0.0
          %322 = vst [vmem:[%s262 + $0x180] sm:$0xff] 0.0
          %323 = vst [vmem:[%s262 + $0x188] sm:$0xff] 0.0
          %324 = vst [vmem:[%s262 + $0x190] sm:$0xff] 0.0
          %325 = vst [vmem:[%s262 + $0x198] sm:$0xff] 0.0
          %326 = vst [vmem:[%s262 + $0x1a0] sm:$0xff] 0.0
          %327 = vst [vmem:[%s262 + $0x1a8] sm:$0xff] 0.0
          %328 = vst [vmem:[%s262 + $0x1b0] sm:$0xff] 0.0
          %329 = vst [vmem:[%s262 + $0x1b8] sm:$0xff] 0.0
          %330 = vst [vmem:[%s262 + $0x1c0] sm:$0xff] 0.0
          %331 = vst [vmem:[%s262 + $0x1c8] sm:$0xff] 0.0
          %332 = vst [vmem:[%s262 + $0x1d0] sm:$0xff] 0.0
          %333 = vst [vmem:[%s262 + $0x1d8] sm:$0xff] 0.0
          %334 = vst [vmem:[%s262 + $0x1e0] sm:$0xff] 0.0
          %335 = vst [vmem:[%s262 + $0x1e8] sm:$0xff] 0.0
          %336 = vst [vmem:[%s262 + $0x1f0] sm:$0xff] 0.0
          %337 = vst [vmem:[%s262 + $0x1f8] sm:$0xff] 0.0
        $region48: #{_forward.1} parent=31 // pred_fallthru
          _
        %v338 = vld [vmem:[%s262] sm:$0xff]
        %v339 = vld [vmem:[%s262 + $0x8] sm:$0xff]
        %v340 = vld [vmem:[%s262 + $0x10] sm:$0xff]
        %v341 = vld [vmem:[%s262 + $0x18] sm:$0xff]
        %v342 = vld [vmem:[%s262 + $0x20] sm:$0xff]
        %v343 = vld [vmem:[%s262 + $0x28] sm:$0xff]
        %v344 = vld [vmem:[%s262 + $0x30] sm:$0xff]
        %v345 = vld [vmem:[%s262 + $0x38] sm:$0xff]
        %v346 = vld [vmem:[%s262 + $0x40] sm:$0xff]
        %v347 = vld [vmem:[%s262 + $0x48] sm:$0xff]
        %v348 = vld [vmem:[%s262 + $0x50] sm:$0xff]
        %v349 = vld [vmem:[%s262 + $0x58] sm:$0xff]
        %v350 = vld [vmem:[%s262 + $0x60] sm:$0xff]
        %v351 = vld [vmem:[%s262 + $0x68] sm:$0xff]
        %v352 = vld [vmem:[%s262 + $0x70] sm:$0xff]
        %v353 = vld [vmem:[%s262 + $0x78] sm:$0xff]
        %v354 = vld [vmem:[%s262 + $0x80] sm:$0xff]
        %v355 = vld [vmem:[%s262 + $0x88] sm:$0xff]
        %v356 = vld [vmem:[%s262 + $0x90] sm:$0xff]
        %v357 = vld [vmem:[%s262 + $0x98] sm:$0xff]
        %v358 = vld [vmem:[%s262 + $0xa0] sm:$0xff]
        %v359 = vld [vmem:[%s262 + $0xa8] sm:$0xff]
        %v360 = vld [vmem:[%s262 + $0xb0] sm:$0xff]
        %v361 = vld [vmem:[%s262 + $0xb8] sm:$0xff]
        %v362 = vld [vmem:[%s262 + $0xc0] sm:$0xff]
        %v363 = vld [vmem:[%s262 + $0xc8] sm:$0xff]
        %v364 = vld [vmem:[%s262 + $0xd0] sm:$0xff]
        %v365 = vld [vmem:[%s262 + $0xd8] sm:$0xff]
        %v366 = vld [vmem:[%s262 + $0xe0] sm:$0xff]
        %v367 = vld [vmem:[%s262 + $0xe8] sm:$0xff]
        %v368 = vld [vmem:[%s262 + $0xf0] sm:$0xff]
        %v369 = vld [vmem:[%s262 + $0xf8] sm:$0xff]
        %v370 = vld [vmem:[%s262 + $0x100] sm:$0xff]
        %v371 = vld [vmem:[%s262 + $0x108] sm:$0xff]
        %v372 = vld [vmem:[%s262 + $0x110] sm:$0xff]
        %v373 = vld [vmem:[%s262 + $0x118] sm:$0xff]
        %v374 = vld [vmem:[%s262 + $0x120] sm:$0xff]
        %v375 = vld [vmem:[%s262 + $0x128] sm:$0xff]
        %v376 = vld [vmem:[%s262 + $0x130] sm:$0xff]
        %v377 = vld [vmem:[%s262 + $0x138] sm:$0xff]
        %v378 = vld [vmem:[%s262 + $0x140] sm:$0xff]
        %v379 = vld [vmem:[%s262 + $0x148] sm:$0xff]
        %v380 = vld [vmem:[%s262 + $0x150] sm:$0xff]
        %v381 = vld [vmem:[%s262 + $0x158] sm:$0xff]
        %v382 = vld [vmem:[%s262 + $0x160] sm:$0xff]
        %v383 = vld [vmem:[%s262 + $0x168] sm:$0xff]
        %v384 = vld [vmem:[%s262 + $0x170] sm:$0xff]
        %v385 = vld [vmem:[%s262 + $0x178] sm:$0xff]
        %v386 = vld [vmem:[%s262 + $0x180] sm:$0xff]
        %v387 = vld [vmem:[%s262 + $0x188] sm:$0xff]
        %v388 = vld [vmem:[%s262 + $0x190] sm:$0xff]
        %v389 = vld [vmem:[%s262 + $0x198] sm:$0xff]
        %v390 = vld [vmem:[%s262 + $0x1a0] sm:$0xff]
        %v391 = vld [vmem:[%s262 + $0x1a8] sm:$0xff]
        %v392 = vld [vmem:[%s262 + $0x1b0] sm:$0xff]
        %v393 = vld [vmem:[%s262 + $0x1b8] sm:$0xff]
        %v394 = vld [vmem:[%s262 + $0x1c0] sm:$0xff]
        %v395 = vld [vmem:[%s262 + $0x1c8] sm:$0xff]
        %v396 = vld [vmem:[%s262 + $0x1d0] sm:$0xff]
        %v397 = vld [vmem:[%s262 + $0x1d8] sm:$0xff]
        %v398 = vld [vmem:[%s262 + $0x1e0] sm:$0xff]
        %v399 = vld [vmem:[%s262 + $0x1e8] sm:$0xff]
        %v400 = vld [vmem:[%s262 + $0x1f0] sm:$0xff]
        %v401 = vld [vmem:[%s262 + $0x1f8] sm:$0xff]
        %v402 = vld [vmem:[%s232] sm:$0xff]
        %v403 = vld [vmem:[%s232 + $0x8] sm:$0xff]
        %v404 = vld [vmem:[%s232 + $0x10] sm:$0xff]
        %v405 = vld [vmem:[%s232 + $0x18] sm:$0xff]
        %v406 = vld [vmem:[%s232 + $0x20] sm:$0xff]
        %v407 = vld [vmem:[%s232 + $0x28] sm:$0xff]
        %v408 = vld [vmem:[%s232 + $0x30] sm:$0xff]
        %v409 = vld [vmem:[%s232 + $0x38] sm:$0xff]
        %v410 = vld [vmem:[%s232 + $0x40] sm:$0xff]
        %v411 = vld [vmem:[%s232 + $0x48] sm:$0xff]
        %v412 = vld [vmem:[%s232 + $0x50] sm:$0xff]
        %v413 = vld [vmem:[%s232 + $0x58] sm:$0xff]
        %v414 = vld [vmem:[%s232 + $0x60] sm:$0xff]
        %v415 = vld [vmem:[%s232 + $0x68] sm:$0xff]
        %v416 = vld [vmem:[%s232 + $0x70] sm:$0xff]
        %v417 = vld [vmem:[%s232 + $0x78] sm:$0xff]
        %v418 = vld [vmem:[%s232 + $0x80] sm:$0xff]
        %v419 = vld [vmem:[%s232 + $0x88] sm:$0xff]
        %v420 = vld [vmem:[%s232 + $0x90] sm:$0xff]
        %v421 = vld [vmem:[%s232 + $0x98] sm:$0xff]
        %v422 = vld [vmem:[%s232 + $0xa0] sm:$0xff]
        %v423 = vld [vmem:[%s232 + $0xa8] sm:$0xff]
        %v424 = vld [vmem:[%s232 + $0xb0] sm:$0xff]
        %v425 = vld [vmem:[%s232 + $0xb8] sm:$0xff]
        %v426 = vld [vmem:[%s232 + $0xc0] sm:$0xff]
        %v427 = vld [vmem:[%s232 + $0xc8] sm:$0xff]
        %v428 = vld [vmem:[%s232 + $0xd0] sm:$0xff]
        %v429 = vld [vmem:[%s232 + $0xd8] sm:$0xff]
        %v430 = vld [vmem:[%s232 + $0xe0] sm:$0xff]
        %v431 = vld [vmem:[%s232 + $0xe8] sm:$0xff]
        %v432 = vld [vmem:[%s232 + $0xf0] sm:$0xff]
        %v433 = vld [vmem:[%s232 + $0xf8] sm:$0xff]
        %v434 = vld [vmem:[%s232 + $0x100] sm:$0xff]
        %v435 = vld [vmem:[%s232 + $0x108] sm:$0xff]
        %v436 = vld [vmem:[%s232 + $0x110] sm:$0xff]
        %v437 = vld [vmem:[%s232 + $0x118] sm:$0xff]
        %v438 = vld [vmem:[%s232 + $0x120] sm:$0xff]
        %v439 = vld [vmem:[%s232 + $0x128] sm:$0xff]
        %v440 = vld [vmem:[%s232 + $0x130] sm:$0xff]
        %v441 = vld [vmem:[%s232 + $0x138] sm:$0xff]
        %v442 = vld [vmem:[%s232 + $0x140] sm:$0xff]
        %v443 = vld [vmem:[%s232 + $0x148] sm:$0xff]
        %v444 = vld [vmem:[%s232 + $0x150] sm:$0xff]
        %v445 = vld [vmem:[%s232 + $0x158] sm:$0xff]
        %v446 = vld [vmem:[%s232 + $0x160] sm:$0xff]
        %v447 = vld [vmem:[%s232 + $0x168] sm:$0xff]
        %v448 = vld [vmem:[%s232 + $0x170] sm:$0xff]
        %v449 = vld [vmem:[%s232 + $0x178] sm:$0xff]
        %v450 = vld [vmem:[%s232 + $0x180] sm:$0xff]
        %v451 = vld [vmem:[%s232 + $0x188] sm:$0xff]
        %v452 = vld [vmem:[%s232 + $0x190] sm:$0xff]
        %v453 = vld [vmem:[%s232 + $0x198] sm:$0xff]
        %v454 = vld [vmem:[%s232 + $0x1a0] sm:$0xff]
        %v455 = vld [vmem:[%s232 + $0x1a8] sm:$0xff]
        %v456 = vld [vmem:[%s232 + $0x1b0] sm:$0xff]
        %v457 = vld [vmem:[%s232 + $0x1b8] sm:$0xff]
        %v458 = vld [vmem:[%s232 + $0x1c0] sm:$0xff]
        %v459 = vld [vmem:[%s232 + $0x1c8] sm:$0xff]
        %v460 = vld [vmem:[%s232 + $0x1d0] sm:$0xff]
        %v461 = vld [vmem:[%s232 + $0x1d8] sm:$0xff]
        %v462 = vld [vmem:[%s232 + $0x1e0] sm:$0xff]
        %v463 = vld [vmem:[%s232 + $0x1e8] sm:$0xff]
        %v464 = vld [vmem:[%s232 + $0x1f0] sm:$0xff]
        %v465 = vld [vmem:[%s232 + $0x1f8] sm:$0xff]
        %v466 = vld [vmem:[%s232 + $0x200] sm:$0xff]
        %v467 = vld [vmem:[%s232 + $0x208] sm:$0xff]
        %v468 = vld [vmem:[%s232 + $0x210] sm:$0xff]
        %v469 = vld [vmem:[%s232 + $0x218] sm:$0xff]
        %v470 = vld [vmem:[%s232 + $0x220] sm:$0xff]
        %v471 = vld [vmem:[%s232 + $0x228] sm:$0xff]
        %v472 = vld [vmem:[%s232 + $0x230] sm:$0xff]
        %v473 = vld [vmem:[%s232 + $0x238] sm:$0xff]
        %v474 = vld [vmem:[%s232 + $0x240] sm:$0xff]
        %v475 = vld [vmem:[%s232 + $0x248] sm:$0xff]
        %v476 = vld [vmem:[%s232 + $0x250] sm:$0xff]
        %v477 = vld [vmem:[%s232 + $0x258] sm:$0xff]
        %v478 = vld [vmem:[%s232 + $0x260] sm:$0xff]
        %v479 = vld [vmem:[%s232 + $0x268] sm:$0xff]
        %v480 = vld [vmem:[%s232 + $0x270] sm:$0xff]
        %v481 = vld [vmem:[%s232 + $0x278] sm:$0xff]
        %v482 = vld [vmem:[%s232 + $0x280] sm:$0xff]
        %v483 = vld [vmem:[%s232 + $0x288] sm:$0xff]
        %v484 = vld [vmem:[%s232 + $0x290] sm:$0xff]
        %v485 = vld [vmem:[%s232 + $0x298] sm:$0xff]
        %v486 = vld [vmem:[%s232 + $0x2a0] sm:$0xff]
        %v487 = vld [vmem:[%s232 + $0x2a8] sm:$0xff]
        %v488 = vld [vmem:[%s232 + $0x2b0] sm:$0xff]
        %v489 = vld [vmem:[%s232 + $0x2b8] sm:$0xff]
        %v490 = vld [vmem:[%s232 + $0x2c0] sm:$0xff]
        %v491 = vld [vmem:[%s232 + $0x2c8] sm:$0xff]
        %v492 = vld [vmem:[%s232 + $0x2d0] sm:$0xff]
        %v493 = vld [vmem:[%s232 + $0x2d8] sm:$0xff]
        %v494 = vld [vmem:[%s232 + $0x2e0] sm:$0xff]
        %v495 = vld [vmem:[%s232 + $0x2e8] sm:$0xff]
        %v496 = vld [vmem:[%s232 + $0x2f0] sm:$0xff]
        %v497 = vld [vmem:[%s232 + $0x2f8] sm:$0xff]
        %v498 = vld [vmem:[%s232 + $0x300] sm:$0xff]
        %v499 = vld [vmem:[%s232 + $0x308] sm:$0xff]
        %v500 = vld [vmem:[%s232 + $0x310] sm:$0xff]
        %v501 = vld [vmem:[%s232 + $0x318] sm:$0xff]
        %v502 = vld [vmem:[%s232 + $0x320] sm:$0xff]
        %v503 = vld [vmem:[%s232 + $0x328] sm:$0xff]
        %v504 = vld [vmem:[%s232 + $0x330] sm:$0xff]
        %v505 = vld [vmem:[%s232 + $0x338] sm:$0xff]
        %v506 = vld [vmem:[%s232 + $0x340] sm:$0xff]
        %v507 = vld [vmem:[%s232 + $0x348] sm:$0xff]
        %v508 = vld [vmem:[%s232 + $0x350] sm:$0xff]
        %v509 = vld [vmem:[%s232 + $0x358] sm:$0xff]
        %v510 = vld [vmem:[%s232 + $0x360] sm:$0xff]
        %v511 = vld [vmem:[%s232 + $0x368] sm:$0xff]
        %v512 = vld [vmem:[%s232 + $0x370] sm:$0xff]
        %v513 = vld [vmem:[%s232 + $0x378] sm:$0xff]
        %v514 = vld [vmem:[%s232 + $0x380] sm:$0xff]
        %v515 = vld [vmem:[%s232 + $0x388] sm:$0xff]
        %v516 = vld [vmem:[%s232 + $0x390] sm:$0xff]
        %v517 = vld [vmem:[%s232 + $0x398] sm:$0xff]
        %v518 = vld [vmem:[%s232 + $0x3a0] sm:$0xff]
        %v519 = vld [vmem:[%s232 + $0x3a8] sm:$0xff]
        %v520 = vld [vmem:[%s232 + $0x3b0] sm:$0xff]
        %v521 = vld [vmem:[%s232 + $0x3b8] sm:$0xff]
        %v522 = vld [vmem:[%s232 + $0x3c0] sm:$0xff]
        %v523 = vld [vmem:[%s232 + $0x3c8] sm:$0xff]
        %v524 = vld [vmem:[%s232 + $0x3d0] sm:$0xff]
        %v525 = vld [vmem:[%s232 + $0x3d8] sm:$0xff]
        %v526 = vld [vmem:[%s232 + $0x3e0] sm:$0xff]
        %v527 = vld [vmem:[%s232 + $0x3e8] sm:$0xff]
        %v528 = vld [vmem:[%s232 + $0x3f0] sm:$0xff]
        %v529 = vld [vmem:[%s232 + $0x3f8] sm:$0xff]
        %v530 = vld [vmem:[#allocation5] sm:$0xff]
        %v531 = vld [vmem:[#allocation5 + $0x8] sm:$0xff]
        %v532 = vld [vmem:[#allocation5 + $0x10] sm:$0xff]
        %v533 = vld [vmem:[#allocation5 + $0x18] sm:$0xff]
        %v534 = vld [vmem:[#allocation5 + $0x20] sm:$0xff]
        %v535 = vld [vmem:[#allocation5 + $0x28] sm:$0xff]
        %v536 = vld [vmem:[#allocation5 + $0x30] sm:$0xff]
        %v537 = vld [vmem:[#allocation5 + $0x38] sm:$0xff]
        %v538 = vld [vmem:[#allocation5 + $0x40] sm:$0xff]
        %v539 = vld [vmem:[#allocation5 + $0x48] sm:$0xff]
        %v540 = vld [vmem:[#allocation5 + $0x50] sm:$0xff]
        %v541 = vld [vmem:[#allocation5 + $0x58] sm:$0xff]
        %v542 = vld [vmem:[#allocation5 + $0x60] sm:$0xff]
        %v543 = vld [vmem:[#allocation5 + $0x68] sm:$0xff]
        %v544 = vld [vmem:[#allocation5 + $0x70] sm:$0xff]
        %v545 = vld [vmem:[#allocation5 + $0x78] sm:$0xff]
        %v546 = vld [vmem:[#allocation5 + $0x80] sm:$0xff]
        %v547 = vld [vmem:[#allocation5 + $0x88] sm:$0xff]
        %v548 = vld [vmem:[#allocation5 + $0x90] sm:$0xff]
        %v549 = vld [vmem:[#allocation5 + $0x98] sm:$0xff]
        %v550 = vld [vmem:[#allocation5 + $0xa0] sm:$0xff]
        %v551 = vld [vmem:[#allocation5 + $0xa8] sm:$0xff]
        %v552 = vld [vmem:[#allocation5 + $0xb0] sm:$0xff]
        %v553 = vld [vmem:[#allocation5 + $0xb8] sm:$0xff]
        %v554 = vld [vmem:[#allocation5 + $0xc0] sm:$0xff]
        %v555 = vld [vmem:[#allocation5 + $0xc8] sm:$0xff]
        %v556 = vld [vmem:[#allocation5 + $0xd0] sm:$0xff]
        %v557 = vld [vmem:[#allocation5 + $0xd8] sm:$0xff]
        %v558 = vld [vmem:[#allocation5 + $0xe0] sm:$0xff]
        %v559 = vld [vmem:[#allocation5 + $0xe8] sm:$0xff]
        %v560 = vld [vmem:[#allocation5 + $0xf0] sm:$0xff]
        %v561 = vld [vmem:[#allocation5 + $0xf8] sm:$0xff]
        %v562 = vld [vmem:[#allocation5 + $0x100] sm:$0xff]
        %v563 = vld [vmem:[#allocation5 + $0x108] sm:$0xff]
        %v564 = vld [vmem:[#allocation5 + $0x110] sm:$0xff]
        %v565 = vld [vmem:[#allocation5 + $0x118] sm:$0xff]
        %v566 = vld [vmem:[#allocation5 + $0x120] sm:$0xff]
        %v567 = vld [vmem:[#allocation5 + $0x128] sm:$0xff]
        %v568 = vld [vmem:[#allocation5 + $0x130] sm:$0xff]
        %v569 = vld [vmem:[#allocation5 + $0x138] sm:$0xff]
        %v570 = vld [vmem:[#allocation5 + $0x140] sm:$0xff]
        %v571 = vld [vmem:[#allocation5 + $0x148] sm:$0xff]
        %v572 = vld [vmem:[#allocation5 + $0x150] sm:$0xff]
        %v573 = vld [vmem:[#allocation5 + $0x158] sm:$0xff]
        %v574 = vld [vmem:[#allocation5 + $0x160] sm:$0xff]
        %v575 = vld [vmem:[#allocation5 + $0x168] sm:$0xff]
        %v576 = vld [vmem:[#allocation5 + $0x170] sm:$0xff]
        %v577 = vld [vmem:[#allocation5 + $0x178] sm:$0xff]
        %v578 = vld [vmem:[#allocation5 + $0x180] sm:$0xff]
        %v579 = vld [vmem:[#allocation5 + $0x188] sm:$0xff]
        %v580 = vld [vmem:[#allocation5 + $0x190] sm:$0xff]
        %v581 = vld [vmem:[#allocation5 + $0x198] sm:$0xff]
        %v582 = vld [vmem:[#allocation5 + $0x1a0] sm:$0xff]
        %v583 = vld [vmem:[#allocation5 + $0x1a8] sm:$0xff]
        %v584 = vld [vmem:[#allocation5 + $0x1b0] sm:$0xff]
        %v585 = vld [vmem:[#allocation5 + $0x1b8] sm:$0xff]
        %v586 = vld [vmem:[#allocation5 + $0x1c0] sm:$0xff]
        %v587 = vld [vmem:[#allocation5 + $0x1c8] sm:$0xff]
        %v588 = vld [vmem:[#allocation5 + $0x1d0] sm:$0xff]
        %v589 = vld [vmem:[#allocation5 + $0x1d8] sm:$0xff]
        %v590 = vld [vmem:[#allocation5 + $0x1e0] sm:$0xff]
        %v591 = vld [vmem:[#allocation5 + $0x1e8] sm:$0xff]
        %v592 = vld [vmem:[#allocation5 + $0x1f0] sm:$0xff]
        %v593 = vld [vmem:[#allocation5 + $0x1f8] sm:$0xff]
        %v594 = vld [vmem:[#allocation5 + $0x200] sm:$0xff]
        %v595 = vld [vmem:[#allocation5 + $0x208] sm:$0xff]
        %v596 = vld [vmem:[#allocation5 + $0x210] sm:$0xff]
        %v597 = vld [vmem:[#allocation5 + $0x218] sm:$0xff]
        %v598 = vld [vmem:[#allocation5 + $0x220] sm:$0xff]
        %v599 = vld [vmem:[#allocation5 + $0x228] sm:$0xff]
        %v600 = vld [vmem:[#allocation5 + $0x230] sm:$0xff]
        %v601 = vld [vmem:[#allocation5 + $0x238] sm:$0xff]
        %v602 = vld [vmem:[#allocation5 + $0x240] sm:$0xff]
        %v603 = vld [vmem:[#allocation5 + $0x248] sm:$0xff]
        %v604 = vld [vmem:[#allocation5 + $0x250] sm:$0xff]
        %v605 = vld [vmem:[#allocation5 + $0x258] sm:$0xff]
        %v606 = vld [vmem:[#allocation5 + $0x260] sm:$0xff]
        %v607 = vld [vmem:[#allocation5 + $0x268] sm:$0xff]
        %v608 = vld [vmem:[#allocation5 + $0x270] sm:$0xff]
        %v609 = vld [vmem:[#allocation5 + $0x278] sm:$0xff]
        %v610 = vld [vmem:[#allocation5 + $0x280] sm:$0xff]
        %v611 = vld [vmem:[#allocation5 + $0x288] sm:$0xff]
        %v612 = vld [vmem:[#allocation5 + $0x290] sm:$0xff]
        %v613 = vld [vmem:[#allocation5 + $0x298] sm:$0xff]
        %v614 = vld [vmem:[#allocation5 + $0x2a0] sm:$0xff]
        %v615 = vld [vmem:[#allocation5 + $0x2a8] sm:$0xff]
        %v616 = vld [vmem:[#allocation5 + $0x2b0] sm:$0xff]
        %v617 = vld [vmem:[#allocation5 + $0x2b8] sm:$0xff]
        %v618 = vld [vmem:[#allocation5 + $0x2c0] sm:$0xff]
        %v619 = vld [vmem:[#allocation5 + $0x2c8] sm:$0xff]
        %v620 = vld [vmem:[#allocation5 + $0x2d0] sm:$0xff]
        %v621 = vld [vmem:[#allocation5 + $0x2d8] sm:$0xff]
        %v622 = vld [vmem:[#allocation5 + $0x2e0] sm:$0xff]
        %v623 = vld [vmem:[#allocation5 + $0x2e8] sm:$0xff]
        %v624 = vld [vmem:[#allocation5 + $0x2f0] sm:$0xff]
        %v625 = vld [vmem:[#allocation5 + $0x2f8] sm:$0xff]
        %v626 = vld [vmem:[#allocation5 + $0x300] sm:$0xff]
        %v627 = vld [vmem:[#allocation5 + $0x308] sm:$0xff]
        %v628 = vld [vmem:[#allocation5 + $0x310] sm:$0xff]
        %v629 = vld [vmem:[#allocation5 + $0x318] sm:$0xff]
        %v630 = vld [vmem:[#allocation5 + $0x320] sm:$0xff]
        %v631 = vld [vmem:[#allocation5 + $0x328] sm:$0xff]
        %v632 = vld [vmem:[#allocation5 + $0x330] sm:$0xff]
        %v633 = vld [vmem:[#allocation5 + $0x338] sm:$0xff]
        %v634 = vld [vmem:[#allocation5 + $0x340] sm:$0xff]
        %v635 = vld [vmem:[#allocation5 + $0x348] sm:$0xff]
        %v636 = vld [vmem:[#allocation5 + $0x350] sm:$0xff]
        %v637 = vld [vmem:[#allocation5 + $0x358] sm:$0xff]
        %v638 = vld [vmem:[#allocation5 + $0x360] sm:$0xff]
        %v639 = vld [vmem:[#allocation5 + $0x368] sm:$0xff]
        %v640 = vld [vmem:[#allocation5 + $0x370] sm:$0xff]
        %v641 = vld [vmem:[#allocation5 + $0x378] sm:$0xff]
        %v642 = vld [vmem:[#allocation5 + $0x380] sm:$0xff]
        %v643 = vld [vmem:[#allocation5 + $0x388] sm:$0xff]
        %v644 = vld [vmem:[#allocation5 + $0x390] sm:$0xff]
        %v645 = vld [vmem:[#allocation5 + $0x398] sm:$0xff]
        %v646 = vld [vmem:[#allocation5 + $0x3a0] sm:$0xff]
        %v647 = vld [vmem:[#allocation5 + $0x3a8] sm:$0xff]
        %v648 = vld [vmem:[#allocation5 + $0x3b0] sm:$0xff]
        %v649 = vld [vmem:[#allocation5 + $0x3b8] sm:$0xff]
        %v650 = vld [vmem:[#allocation5 + $0x3c0] sm:$0xff]
        %v651 = vld [vmem:[#allocation5 + $0x3c8] sm:$0xff]
        %v652 = vld [vmem:[#allocation5 + $0x3d0] sm:$0xff]
        %v653 = vld [vmem:[#allocation5 + $0x3d8] sm:$0xff]
        %v654 = vld [vmem:[#allocation5 + $0x3e0] sm:$0xff]
        %v655 = vld [vmem:[#allocation5 + $0x3e8] sm:$0xff]
        %v656 = vld [vmem:[#allocation5 + $0x3f0] sm:$0xff]
        %v657 = vld [vmem:[#allocation5 + $0x3f8] sm:$0xff]
        %v658 = vld [vmem:[#allocation5 + $0x400] sm:$0xff]
        %v659 = vld [vmem:[#allocation5 + $0x408] sm:$0xff]
        %v660 = vld [vmem:[#allocation5 + $0x410] sm:$0xff]
        %v661 = vld [vmem:[#allocation5 + $0x418] sm:$0xff]
        %v662 = vld [vmem:[#allocation5 + $0x420] sm:$0xff]
        %v663 = vld [vmem:[#allocation5 + $0x428] sm:$0xff]
        %v664 = vld [vmem:[#allocation5 + $0x430] sm:$0xff]
        %v665 = vld [vmem:[#allocation5 + $0x438] sm:$0xff]
        %v666 = vld [vmem:[#allocation5 + $0x440] sm:$0xff]
        %v667 = vld [vmem:[#allocation5 + $0x448] sm:$0xff]
        %v668 = vld [vmem:[#allocation5 + $0x450] sm:$0xff]
        %v669 = vld [vmem:[#allocation5 + $0x458] sm:$0xff]
        %v670 = vld [vmem:[#allocation5 + $0x460] sm:$0xff]
        %v671 = vld [vmem:[#allocation5 + $0x468] sm:$0xff]
        %v672 = vld [vmem:[#allocation5 + $0x470] sm:$0xff]
        %v673 = vld [vmem:[#allocation5 + $0x478] sm:$0xff]
        %v674 = vld [vmem:[#allocation5 + $0x480] sm:$0xff]
        %v675 = vld [vmem:[#allocation5 + $0x488] sm:$0xff]
        %v676 = vld [vmem:[#allocation5 + $0x490] sm:$0xff]
        %v677 = vld [vmem:[#allocation5 + $0x498] sm:$0xff]
        %v678 = vld [vmem:[#allocation5 + $0x4a0] sm:$0xff]
        %v679 = vld [vmem:[#allocation5 + $0x4a8] sm:$0xff]
        %v680 = vld [vmem:[#allocation5 + $0x4b0] sm:$0xff]
        %v681 = vld [vmem:[#allocation5 + $0x4b8] sm:$0xff]
        %v682 = vld [vmem:[#allocation5 + $0x4c0] sm:$0xff]
        %v683 = vld [vmem:[#allocation5 + $0x4c8] sm:$0xff]
        %v684 = vld [vmem:[#allocation5 + $0x4d0] sm:$0xff]
        %v685 = vld [vmem:[#allocation5 + $0x4d8] sm:$0xff]
        %v686 = vld [vmem:[#allocation5 + $0x4e0] sm:$0xff]
        %v687 = vld [vmem:[#allocation5 + $0x4e8] sm:$0xff]
        %v688 = vld [vmem:[#allocation5 + $0x4f0] sm:$0xff]
        %v689 = vld [vmem:[#allocation5 + $0x4f8] sm:$0xff]
        %v690 = vld [vmem:[#allocation5 + $0x500] sm:$0xff]
        %v691 = vld [vmem:[#allocation5 + $0x508] sm:$0xff]
        %v692 = vld [vmem:[#allocation5 + $0x510] sm:$0xff]
        %v693 = vld [vmem:[#allocation5 + $0x518] sm:$0xff]
        %v694 = vld [vmem:[#allocation5 + $0x520] sm:$0xff]
        %v695 = vld [vmem:[#allocation5 + $0x528] sm:$0xff]
        %v696 = vld [vmem:[#allocation5 + $0x530] sm:$0xff]
        %v697 = vld [vmem:[#allocation5 + $0x538] sm:$0xff]
        %v698 = vld [vmem:[#allocation5 + $0x540] sm:$0xff]
        %v699 = vld [vmem:[#allocation5 + $0x548] sm:$0xff]
        %v700 = vld [vmem:[#allocation5 + $0x550] sm:$0xff]
        %v701 = vld [vmem:[#allocation5 + $0x558] sm:$0xff]
        %v702 = vld [vmem:[#allocation5 + $0x560] sm:$0xff]
        %v703 = vld [vmem:[#allocation5 + $0x568] sm:$0xff]
        %v704 = vld [vmem:[#allocation5 + $0x570] sm:$0xff]
        %v705 = vld [vmem:[#allocation5 + $0x578] sm:$0xff]
        %v706 = vld [vmem:[#allocation5 + $0x580] sm:$0xff]
        %v707 = vld [vmem:[#allocation5 + $0x588] sm:$0xff]
        %v708 = vld [vmem:[#allocation5 + $0x590] sm:$0xff]
        %v709 = vld [vmem:[#allocation5 + $0x598] sm:$0xff]
        %v710 = vld [vmem:[#allocation5 + $0x5a0] sm:$0xff]
        %v711 = vld [vmem:[#allocation5 + $0x5a8] sm:$0xff]
        %v712 = vld [vmem:[#allocation5 + $0x5b0] sm:$0xff]
        %v713 = vld [vmem:[#allocation5 + $0x5b8] sm:$0xff]
        %v714 = vld [vmem:[#allocation5 + $0x5c0] sm:$0xff]
        %v715 = vld [vmem:[#allocation5 + $0x5c8] sm:$0xff]
        %v716 = vld [vmem:[#allocation5 + $0x5d0] sm:$0xff]
        %v717 = vld [vmem:[#allocation5 + $0x5d8] sm:$0xff]
        %v718 = vld [vmem:[#allocation5 + $0x5e0] sm:$0xff]
        %v719 = vld [vmem:[#allocation5 + $0x5e8] sm:$0xff]
        %v720 = vld [vmem:[#allocation5 + $0x5f0] sm:$0xff]
        %v721 = vld [vmem:[#allocation5 + $0x5f8] sm:$0xff]
        %v722 = vld [vmem:[#allocation5 + $0x600] sm:$0xff]
        %v723 = vld [vmem:[#allocation5 + $0x608] sm:$0xff]
        %v724 = vld [vmem:[#allocation5 + $0x610] sm:$0xff]
        %v725 = vld [vmem:[#allocation5 + $0x618] sm:$0xff]
        %v726 = vld [vmem:[#allocation5 + $0x620] sm:$0xff]
        %v727 = vld [vmem:[#allocation5 + $0x628] sm:$0xff]
        %v728 = vld [vmem:[#allocation5 + $0x630] sm:$0xff]
        %v729 = vld [vmem:[#allocation5 + $0x638] sm:$0xff]
        %v730 = vld [vmem:[#allocation5 + $0x640] sm:$0xff]
        %v731 = vld [vmem:[#allocation5 + $0x648] sm:$0xff]
        %v732 = vld [vmem:[#allocation5 + $0x650] sm:$0xff]
        %v733 = vld [vmem:[#allocation5 + $0x658] sm:$0xff]
        %v734 = vld [vmem:[#allocation5 + $0x660] sm:$0xff]
        %v735 = vld [vmem:[#allocation5 + $0x668] sm:$0xff]
        %v736 = vld [vmem:[#allocation5 + $0x670] sm:$0xff]
        %v737 = vld [vmem:[#allocation5 + $0x678] sm:$0xff]
        %v738 = vld [vmem:[#allocation5 + $0x680] sm:$0xff]
        %v739 = vld [vmem:[#allocation5 + $0x688] sm:$0xff]
        %v740 = vld [vmem:[#allocation5 + $0x690] sm:$0xff]
        %v741 = vld [vmem:[#allocation5 + $0x698] sm:$0xff]
        %v742 = vld [vmem:[#allocation5 + $0x6a0] sm:$0xff]
        %v743 = vld [vmem:[#allocation5 + $0x6a8] sm:$0xff]
        %v744 = vld [vmem:[#allocation5 + $0x6b0] sm:$0xff]
        %v745 = vld [vmem:[#allocation5 + $0x6b8] sm:$0xff]
        %v746 = vld [vmem:[#allocation5 + $0x6c0] sm:$0xff]
        %v747 = vld [vmem:[#allocation5 + $0x6c8] sm:$0xff]
        %v748 = vld [vmem:[#allocation5 + $0x6d0] sm:$0xff]
        %v749 = vld [vmem:[#allocation5 + $0x6d8] sm:$0xff]
        %v750 = vld [vmem:[#allocation5 + $0x6e0] sm:$0xff]
        %v751 = vld [vmem:[#allocation5 + $0x6e8] sm:$0xff]
        %v752 = vld [vmem:[#allocation5 + $0x6f0] sm:$0xff]
        %v753 = vld [vmem:[#allocation5 + $0x6f8] sm:$0xff]
        %v754 = vld [vmem:[#allocation5 + $0x700] sm:$0xff]
        %v755 = vld [vmem:[#allocation5 + $0x708] sm:$0xff]
        %v756 = vld [vmem:[#allocation5 + $0x710] sm:$0xff]
        %v757 = vld [vmem:[#allocation5 + $0x718] sm:$0xff]
        %v758 = vld [vmem:[#allocation5 + $0x720] sm:$0xff]
        %v759 = vld [vmem:[#allocation5 + $0x728] sm:$0xff]
        %v760 = vld [vmem:[#allocation5 + $0x730] sm:$0xff]
        %v761 = vld [vmem:[#allocation5 + $0x738] sm:$0xff]
        %v762 = vld [vmem:[#allocation5 + $0x740] sm:$0xff]
        %v763 = vld [vmem:[#allocation5 + $0x748] sm:$0xff]
        %v764 = vld [vmem:[#allocation5 + $0x750] sm:$0xff]
        %v765 = vld [vmem:[#allocation5 + $0x758] sm:$0xff]
        %v766 = vld [vmem:[#allocation5 + $0x760] sm:$0xff]
        %v767 = vld [vmem:[#allocation5 + $0x768] sm:$0xff]
        %v768 = vld [vmem:[#allocation5 + $0x770] sm:$0xff]
        %v769 = vld [vmem:[#allocation5 + $0x778] sm:$0xff]
        %v770 = vld [vmem:[#allocation5 + $0x780] sm:$0xff]
        %v771 = vld [vmem:[#allocation5 + $0x788] sm:$0xff]
        %v772 = vld [vmem:[#allocation5 + $0x790] sm:$0xff]
        %v773 = vld [vmem:[#allocation5 + $0x798] sm:$0xff]
        %v774 = vld [vmem:[#allocation5 + $0x7a0] sm:$0xff]
        %v775 = vld [vmem:[#allocation5 + $0x7a8] sm:$0xff]
        %v776 = vld [vmem:[#allocation5 + $0x7b0] sm:$0xff]
        %v777 = vld [vmem:[#allocation5 + $0x7b8] sm:$0xff]
        %v778 = vld [vmem:[#allocation5 + $0x7c0] sm:$0xff]
        %v779 = vld [vmem:[#allocation5 + $0x7c8] sm:$0xff]
        %v780 = vld [vmem:[#allocation5 + $0x7d0] sm:$0xff]
        %v781 = vld [vmem:[#allocation5 + $0x7d8] sm:$0xff]
        %v782 = vld [vmem:[#allocation5 + $0x7e0] sm:$0xff]
        %v783 = vld [vmem:[#allocation5 + $0x7e8] sm:$0xff]
        %v784 = vld [vmem:[#allocation5 + $0x7f0] sm:$0xff]
        %v785 = vld [vmem:[#allocation5 + $0x7f8] sm:$0xff]
        %v786 = vld [vmem:[#allocation5 + $0x800] sm:$0xff]
        %v787 = vld [vmem:[#allocation5 + $0x808] sm:$0xff]
        %v788 = vld [vmem:[#allocation5 + $0x810] sm:$0xff]
        %v789 = vld [vmem:[#allocation5 + $0x818] sm:$0xff]
        %v790 = vld [vmem:[#allocation5 + $0x820] sm:$0xff]
        %v791 = vld [vmem:[#allocation5 + $0x828] sm:$0xff]
        %v792 = vld [vmem:[#allocation5 + $0x830] sm:$0xff]
        %v793 = vld [vmem:[#allocation5 + $0x838] sm:$0xff]
        %v794 = vld [vmem:[#allocation5 + $0x840] sm:$0xff]
        %v795 = vld [vmem:[#allocation5 + $0x848] sm:$0xff]
        %v796 = vld [vmem:[#allocation5 + $0x850] sm:$0xff]
        %v797 = vld [vmem:[#allocation5 + $0x858] sm:$0xff]
        %v798 = vld [vmem:[#allocation5 + $0x860] sm:$0xff]
        %v799 = vld [vmem:[#allocation5 + $0x868] sm:$0xff]
        %v800 = vld [vmem:[#allocation5 + $0x870] sm:$0xff]
        %v801 = vld [vmem:[#allocation5 + $0x878] sm:$0xff]
        %v802 = vld [vmem:[#allocation5 + $0x880] sm:$0xff]
        %v803 = vld [vmem:[#allocation5 + $0x888] sm:$0xff]
        %v804 = vld [vmem:[#allocation5 + $0x890] sm:$0xff]
        %v805 = vld [vmem:[#allocation5 + $0x898] sm:$0xff]
        %v806 = vld [vmem:[#allocation5 + $0x8a0] sm:$0xff]
        %v807 = vld [vmem:[#allocation5 + $0x8a8] sm:$0xff]
        %v808 = vld [vmem:[#allocation5 + $0x8b0] sm:$0xff]
        %v809 = vld [vmem:[#allocation5 + $0x8b8] sm:$0xff]
        %v810 = vld [vmem:[#allocation5 + $0x8c0] sm:$0xff]
        %v811 = vld [vmem:[#allocation5 + $0x8c8] sm:$0xff]
        %v812 = vld [vmem:[#allocation5 + $0x8d0] sm:$0xff]
        %v813 = vld [vmem:[#allocation5 + $0x8d8] sm:$0xff]
        %v814 = vld [vmem:[#allocation5 + $0x8e0] sm:$0xff]
        %v815 = vld [vmem:[#allocation5 + $0x8e8] sm:$0xff]
        %v816 = vld [vmem:[#allocation5 + $0x8f0] sm:$0xff]
        %v817 = vld [vmem:[#allocation5 + $0x8f8] sm:$0xff]
        %v818 = vld [vmem:[#allocation5 + $0x900] sm:$0xff]
        %v819 = vld [vmem:[#allocation5 + $0x908] sm:$0xff]
        %v820 = vld [vmem:[#allocation5 + $0x910] sm:$0xff]
        %v821 = vld [vmem:[#allocation5 + $0x918] sm:$0xff]
        %v822 = vld [vmem:[#allocation5 + $0x920] sm:$0xff]
        %v823 = vld [vmem:[#allocation5 + $0x928] sm:$0xff]
        %v824 = vld [vmem:[#allocation5 + $0x930] sm:$0xff]
        %v825 = vld [vmem:[#allocation5 + $0x938] sm:$0xff]
        %v826 = vld [vmem:[#allocation5 + $0x940] sm:$0xff]
        %v827 = vld [vmem:[#allocation5 + $0x948] sm:$0xff]
        %v828 = vld [vmem:[#allocation5 + $0x950] sm:$0xff]
        %v829 = vld [vmem:[#allocation5 + $0x958] sm:$0xff]
        %v830 = vld [vmem:[#allocation5 + $0x960] sm:$0xff]
        %v831 = vld [vmem:[#allocation5 + $0x968] sm:$0xff]
        %v832 = vld [vmem:[#allocation5 + $0x970] sm:$0xff]
        %v833 = vld [vmem:[#allocation5 + $0x978] sm:$0xff]
        %v834 = vld [vmem:[#allocation5 + $0x980] sm:$0xff]
        %v835 = vld [vmem:[#allocation5 + $0x988] sm:$0xff]
        %v836 = vld [vmem:[#allocation5 + $0x990] sm:$0xff]
        %v837 = vld [vmem:[#allocation5 + $0x998] sm:$0xff]
        %v838 = vld [vmem:[#allocation5 + $0x9a0] sm:$0xff]
        %v839 = vld [vmem:[#allocation5 + $0x9a8] sm:$0xff]
        %v840 = vld [vmem:[#allocation5 + $0x9b0] sm:$0xff]
        %v841 = vld [vmem:[#allocation5 + $0x9b8] sm:$0xff]
        %v842 = vld [vmem:[#allocation5 + $0x9c0] sm:$0xff]
        %v843 = vld [vmem:[#allocation5 + $0x9c8] sm:$0xff]
        %v844 = vld [vmem:[#allocation5 + $0x9d0] sm:$0xff]
        %v845 = vld [vmem:[#allocation5 + $0x9d8] sm:$0xff]
        %v846 = vld [vmem:[#allocation5 + $0x9e0] sm:$0xff]
        %v847 = vld [vmem:[#allocation5 + $0x9e8] sm:$0xff]
        %v848 = vld [vmem:[#allocation5 + $0x9f0] sm:$0xff]
        %v849 = vld [vmem:[#allocation5 + $0x9f8] sm:$0xff]
        %v850 = vld [vmem:[#allocation5 + $0xa00] sm:$0xff]
        %v851 = vld [vmem:[#allocation5 + $0xa08] sm:$0xff]
        %v852 = vld [vmem:[#allocation5 + $0xa10] sm:$0xff]
        %v853 = vld [vmem:[#allocation5 + $0xa18] sm:$0xff]
        %v854 = vld [vmem:[#allocation5 + $0xa20] sm:$0xff]
        %v855 = vld [vmem:[#allocation5 + $0xa28] sm:$0xff]
        %v856 = vld [vmem:[#allocation5 + $0xa30] sm:$0xff]
        %v857 = vld [vmem:[#allocation5 + $0xa38] sm:$0xff]
        %v858 = vld [vmem:[#allocation5 + $0xa40] sm:$0xff]
        %v859 = vld [vmem:[#allocation5 + $0xa48] sm:$0xff]
        %v860 = vld [vmem:[#allocation5 + $0xa50] sm:$0xff]
        %v861 = vld [vmem:[#allocation5 + $0xa58] sm:$0xff]
        %v862 = vld [vmem:[#allocation5 + $0xa60] sm:$0xff]
        %v863 = vld [vmem:[#allocation5 + $0xa68] sm:$0xff]
        %v864 = vld [vmem:[#allocation5 + $0xa70] sm:$0xff]
        %v865 = vld [vmem:[#allocation5 + $0xa78] sm:$0xff]
        %v866 = vld [vmem:[#allocation5 + $0xa80] sm:$0xff]
        %v867 = vld [vmem:[#allocation5 + $0xa88] sm:$0xff]
        %v868 = vld [vmem:[#allocation5 + $0xa90] sm:$0xff]
        %v869 = vld [vmem:[#allocation5 + $0xa98] sm:$0xff]
        %v870 = vld [vmem:[#allocation5 + $0xaa0] sm:$0xff]
        %v871 = vld [vmem:[#allocation5 + $0xaa8] sm:$0xff]
        %v872 = vld [vmem:[#allocation5 + $0xab0] sm:$0xff]
        %v873 = vld [vmem:[#allocation5 + $0xab8] sm:$0xff]
        %v874 = vld [vmem:[#allocation5 + $0xac0] sm:$0xff]
        %v875 = vld [vmem:[#allocation5 + $0xac8] sm:$0xff]
        %v876 = vld [vmem:[#allocation5 + $0xad0] sm:$0xff]
        %v877 = vld [vmem:[#allocation5 + $0xad8] sm:$0xff]
        %v878 = vld [vmem:[#allocation5 + $0xae0] sm:$0xff]
        %v879 = vld [vmem:[#allocation5 + $0xae8] sm:$0xff]
        %v880 = vld [vmem:[#allocation5 + $0xaf0] sm:$0xff]
        %v881 = vld [vmem:[#allocation5 + $0xaf8] sm:$0xff]
        %v882 = vld [vmem:[#allocation5 + $0xb00] sm:$0xff]
        %v883 = vld [vmem:[#allocation5 + $0xb08] sm:$0xff]
        %v884 = vld [vmem:[#allocation5 + $0xb10] sm:$0xff]
        %v885 = vld [vmem:[#allocation5 + $0xb18] sm:$0xff]
        %v886 = vld [vmem:[#allocation5 + $0xb20] sm:$0xff]
        %v887 = vld [vmem:[#allocation5 + $0xb28] sm:$0xff]
        %v888 = vld [vmem:[#allocation5 + $0xb30] sm:$0xff]
        %v889 = vld [vmem:[#allocation5 + $0xb38] sm:$0xff]
        %v890 = vld [vmem:[#allocation5 + $0xb40] sm:$0xff]
        %v891 = vld [vmem:[#allocation5 + $0xb48] sm:$0xff]
        %v892 = vld [vmem:[#allocation5 + $0xb50] sm:$0xff]
        %v893 = vld [vmem:[#allocation5 + $0xb58] sm:$0xff]
        %v894 = vld [vmem:[#allocation5 + $0xb60] sm:$0xff]
        %v895 = vld [vmem:[#allocation5 + $0xb68] sm:$0xff]
        %v896 = vld [vmem:[#allocation5 + $0xb70] sm:$0xff]
        %v897 = vld [vmem:[#allocation5 + $0xb78] sm:$0xff]
        %v898 = vld [vmem:[#allocation5 + $0xb80] sm:$0xff]
        %v899 = vld [vmem:[#allocation5 + $0xb88] sm:$0xff]
        %v900 = vld [vmem:[#allocation5 + $0xb90] sm:$0xff]
        %v901 = vld [vmem:[#allocation5 + $0xb98] sm:$0xff]
        %v902 = vld [vmem:[#allocation5 + $0xba0] sm:$0xff]
        %v903 = vld [vmem:[#allocation5 + $0xba8] sm:$0xff]
        %v904 = vld [vmem:[#allocation5 + $0xbb0] sm:$0xff]
        %v905 = vld [vmem:[#allocation5 + $0xbb8] sm:$0xff]
        %v906 = vld [vmem:[#allocation5 + $0xbc0] sm:$0xff]
        %v907 = vld [vmem:[#allocation5 + $0xbc8] sm:$0xff]
        %v908 = vld [vmem:[#allocation5 + $0xbd0] sm:$0xff]
        %v909 = vld [vmem:[#allocation5 + $0xbd8] sm:$0xff]
        %v910 = vld [vmem:[#allocation5 + $0xbe0] sm:$0xff]
        %v911 = vld [vmem:[#allocation5 + $0xbe8] sm:$0xff]
        %v912 = vld [vmem:[#allocation5 + $0xbf0] sm:$0xff]
        %v913 = vld [vmem:[#allocation5 + $0xbf8] sm:$0xff]
        %v914 = vld [vmem:[#allocation5 + $0xc00] sm:$0xff]
        %v915 = vld [vmem:[#allocation5 + $0xc08] sm:$0xff]
        %v916 = vld [vmem:[#allocation5 + $0xc10] sm:$0xff]
        %v917 = vld [vmem:[#allocation5 + $0xc18] sm:$0xff]
        %v918 = vld [vmem:[#allocation5 + $0xc20] sm:$0xff]
        %v919 = vld [vmem:[#allocation5 + $0xc28] sm:$0xff]
        %v920 = vld [vmem:[#allocation5 + $0xc30] sm:$0xff]
        %v921 = vld [vmem:[#allocation5 + $0xc38] sm:$0xff]
        %v922 = vld [vmem:[#allocation5 + $0xc40] sm:$0xff]
        %v923 = vld [vmem:[#allocation5 + $0xc48] sm:$0xff]
        %v924 = vld [vmem:[#allocation5 + $0xc50] sm:$0xff]
        %v925 = vld [vmem:[#allocation5 + $0xc58] sm:$0xff]
        %v926 = vld [vmem:[#allocation5 + $0xc60] sm:$0xff]
        %v927 = vld [vmem:[#allocation5 + $0xc68] sm:$0xff]
        %v928 = vld [vmem:[#allocation5 + $0xc70] sm:$0xff]
        %v929 = vld [vmem:[#allocation5 + $0xc78] sm:$0xff]
        %v930 = vld [vmem:[#allocation5 + $0xc80] sm:$0xff]
        %v931 = vld [vmem:[#allocation5 + $0xc88] sm:$0xff]
        %v932 = vld [vmem:[#allocation5 + $0xc90] sm:$0xff]
        %v933 = vld [vmem:[#allocation5 + $0xc98] sm:$0xff]
        %v934 = vld [vmem:[#allocation5 + $0xca0] sm:$0xff]
        %v935 = vld [vmem:[#allocation5 + $0xca8] sm:$0xff]
        %v936 = vld [vmem:[#allocation5 + $0xcb0] sm:$0xff]
        %v937 = vld [vmem:[#allocation5 + $0xcb8] sm:$0xff]
        %v938 = vld [vmem:[#allocation5 + $0xcc0] sm:$0xff]
        %v939 = vld [vmem:[#allocation5 + $0xcc8] sm:$0xff]
        %v940 = vld [vmem:[#allocation5 + $0xcd0] sm:$0xff]
        %v941 = vld [vmem:[#allocation5 + $0xcd8] sm:$0xff]
        %v942 = vld [vmem:[#allocation5 + $0xce0] sm:$0xff]
        %v943 = vld [vmem:[#allocation5 + $0xce8] sm:$0xff]
        %v944 = vld [vmem:[#allocation5 + $0xcf0] sm:$0xff]
        %v945 = vld [vmem:[#allocation5 + $0xcf8] sm:$0xff]
        %v946 = vld [vmem:[#allocation5 + $0xd00] sm:$0xff]
        %v947 = vld [vmem:[#allocation5 + $0xd08] sm:$0xff]
        %v948 = vld [vmem:[#allocation5 + $0xd10] sm:$0xff]
        %v949 = vld [vmem:[#allocation5 + $0xd18] sm:$0xff]
        %v950 = vld [vmem:[#allocation5 + $0xd20] sm:$0xff]
        %v951 = vld [vmem:[#allocation5 + $0xd28] sm:$0xff]
        %v952 = vld [vmem:[#allocation5 + $0xd30] sm:$0xff]
        %v953 = vld [vmem:[#allocation5 + $0xd38] sm:$0xff]
        %v954 = vld [vmem:[#allocation5 + $0xd40] sm:$0xff]
        %v955 = vld [vmem:[#allocation5 + $0xd48] sm:$0xff]
        %v956 = vld [vmem:[#allocation5 + $0xd50] sm:$0xff]
        %v957 = vld [vmem:[#allocation5 + $0xd58] sm:$0xff]
        %v958 = vld [vmem:[#allocation5 + $0xd60] sm:$0xff]
        %v959 = vld [vmem:[#allocation5 + $0xd68] sm:$0xff]
        %v960 = vld [vmem:[#allocation5 + $0xd70] sm:$0xff]
        %v961 = vld [vmem:[#allocation5 + $0xd78] sm:$0xff]
        %v962 = vld [vmem:[#allocation5 + $0xd80] sm:$0xff]
        %v963 = vld [vmem:[#allocation5 + $0xd88] sm:$0xff]
        %v964 = vld [vmem:[#allocation5 + $0xd90] sm:$0xff]
        %v965 = vld [vmem:[#allocation5 + $0xd98] sm:$0xff]
        %v966 = vld [vmem:[#allocation5 + $0xda0] sm:$0xff]
        %v967 = vld [vmem:[#allocation5 + $0xda8] sm:$0xff]
        %v968 = vld [vmem:[#allocation5 + $0xdb0] sm:$0xff]
        %v969 = vld [vmem:[#allocation5 + $0xdb8] sm:$0xff]
        %v970 = vld [vmem:[#allocation5 + $0xdc0] sm:$0xff]
        %v971 = vld [vmem:[#allocation5 + $0xdc8] sm:$0xff]
        %v972 = vld [vmem:[#allocation5 + $0xdd0] sm:$0xff]
        %v973 = vld [vmem:[#allocation5 + $0xdd8] sm:$0xff]
        %v974 = vld [vmem:[#allocation5 + $0xde0] sm:$0xff]
        %v975 = vld [vmem:[#allocation5 + $0xde8] sm:$0xff]
        %v976 = vld [vmem:[#allocation5 + $0xdf0] sm:$0xff]
        %v977 = vld [vmem:[#allocation5 + $0xdf8] sm:$0xff]
        %v978 = vld [vmem:[#allocation5 + $0xe00] sm:$0xff]
        %v979 = vld [vmem:[#allocation5 + $0xe08] sm:$0xff]
        %v980 = vld [vmem:[#allocation5 + $0xe10] sm:$0xff]
        %v981 = vld [vmem:[#allocation5 + $0xe18] sm:$0xff]
        %v982 = vld [vmem:[#allocation5 + $0xe20] sm:$0xff]
        %v983 = vld [vmem:[#allocation5 + $0xe28] sm:$0xff]
        %v984 = vld [vmem:[#allocation5 + $0xe30] sm:$0xff]
        %v985 = vld [vmem:[#allocation5 + $0xe38] sm:$0xff]
        %v986 = vld [vmem:[#allocation5 + $0xe40] sm:$0xff]
        %v987 = vld [vmem:[#allocation5 + $0xe48] sm:$0xff]
        %v988 = vld [vmem:[#allocation5 + $0xe50] sm:$0xff]
        %v989 = vld [vmem:[#allocation5 + $0xe58] sm:$0xff]
        %v990 = vld [vmem:[#allocation5 + $0xe60] sm:$0xff]
        %v991 = vld [vmem:[#allocation5 + $0xe68] sm:$0xff]
        %v992 = vld [vmem:[#allocation5 + $0xe70] sm:$0xff]
        %v993 = vld [vmem:[#allocation5 + $0xe78] sm:$0xff]
        %v994 = vld [vmem:[#allocation5 + $0xe80] sm:$0xff]
        %v995 = vld [vmem:[#allocation5 + $0xe88] sm:$0xff]
        %v996 = vld [vmem:[#allocation5 + $0xe90] sm:$0xff]
        %v997 = vld [vmem:[#allocation5 + $0xe98] sm:$0xff]
        %v998 = vld [vmem:[#allocation5 + $0xea0] sm:$0xff]
        %v999 = vld [vmem:[#allocation5 + $0xea8] sm:$0xff]
        %v1000 = vld [vmem:[#allocation5 + $0xeb0] sm:$0xff]
        %v1001 = vld [vmem:[#allocation5 + $0xeb8] sm:$0xff]
        %v1002 = vld [vmem:[#allocation5 + $0xec0] sm:$0xff]
        %v1003 = vld [vmem:[#allocation5 + $0xec8] sm:$0xff]
        %v1004 = vld [vmem:[#allocation5 + $0xed0] sm:$0xff]
        %v1005 = vld [vmem:[#allocation5 + $0xed8] sm:$0xff]
        %v1006 = vld [vmem:[#allocation5 + $0xee0] sm:$0xff]
        %v1007 = vld [vmem:[#allocation5 + $0xee8] sm:$0xff]
        %v1008 = vld [vmem:[#allocation5 + $0xef0] sm:$0xff]
        %v1009 = vld [vmem:[#allocation5 + $0xef8] sm:$0xff]
        %v1010 = vld [vmem:[#allocation5 + $0xf00] sm:$0xff]
        %v1011 = vld [vmem:[#allocation5 + $0xf08] sm:$0xff]
        %v1012 = vld [vmem:[#allocation5 + $0xf10] sm:$0xff]
        %v1013 = vld [vmem:[#allocation5 + $0xf18] sm:$0xff]
        %v1014 = vld [vmem:[#allocation5 + $0xf20] sm:$0xff]
        %v1015 = vld [vmem:[#allocation5 + $0xf28] sm:$0xff]
        %v1016 = vld [vmem:[#allocation5 + $0xf30] sm:$0xff]
        %v1017 = vld [vmem:[#allocation5 + $0xf38] sm:$0xff]
        %v1018 = vld [vmem:[#allocation5 + $0xf40] sm:$0xff]
        %v1019 = vld [vmem:[#allocation5 + $0xf48] sm:$0xff]
        %v1020 = vld [vmem:[#allocation5 + $0xf50] sm:$0xff]
        %v1021 = vld [vmem:[#allocation5 + $0xf58] sm:$0xff]
        %v1022 = vld [vmem:[#allocation5 + $0xf60] sm:$0xff]
        %v1023 = vld [vmem:[#allocation5 + $0xf68] sm:$0xff]
        %v1024 = vld [vmem:[#allocation5 + $0xf70] sm:$0xff]
        %v1025 = vld [vmem:[#allocation5 + $0xf78] sm:$0xff]
        %v1026 = vld [vmem:[#allocation5 + $0xf80] sm:$0xff]
        %v1027 = vld [vmem:[#allocation5 + $0xf88] sm:$0xff]
        %v1028 = vld [vmem:[#allocation5 + $0xf90] sm:$0xff]
        %v1029 = vld [vmem:[#allocation5 + $0xf98] sm:$0xff]
        %v1030 = vld [vmem:[#allocation5 + $0xfa0] sm:$0xff]
        %v1031 = vld [vmem:[#allocation5 + $0xfa8] sm:$0xff]
        %v1032 = vld [vmem:[#allocation5 + $0xfb0] sm:$0xff]
        %v1033 = vld [vmem:[#allocation5 + $0xfb8] sm:$0xff]
        %v1034 = vld [vmem:[#allocation5 + $0xfc0] sm:$0xff]
        %v1035 = vld [vmem:[#allocation5 + $0xfc8] sm:$0xff]
        %v1036 = vld [vmem:[#allocation5 + $0xfd0] sm:$0xff]
        %v1037 = vld [vmem:[#allocation5 + $0xfd8] sm:$0xff]
        %v1038 = vld [vmem:[#allocation5 + $0xfe0] sm:$0xff]
        %v1039 = vld [vmem:[#allocation5 + $0xfe8] sm:$0xff]
        %v1040 = vld [vmem:[#allocation5 + $0xff0] sm:$0xff]
        %v1041 = vld [vmem:[#allocation5 + $0xff8] sm:$0xff]
        %1042 = vmatprep.subr.mxu0 %v591
        %1043 = vmatpush1.msra.mxu0 %v590
        %1044 = vmatprep.subr.mxu0 %v587
        %1045 = vmatpush1.msra.mxu0 %v586
        %1046 = vmatprep.subr.mxu0 %v583
        %1047 = vmatpush1.msra.mxu0 %v582
        %1048 = vmatprep.subr.mxu0 %v579
        %1049 = vmatpush1.msra.mxu0 %v578
        %1050 = vmatprep.subr.mxu0 %v575
        %1051 = vmatpush1.msra.mxu0 %v574
        %1052 = vmatprep.subr.mxu0 %v571
        %1053 = vmatpush1.msra.mxu0 %v570
        %1054 = vmatprep.subr.mxu0 %v567
        %1055 = vmatpush1.msra.mxu0 %v566
        %1056 = vmatprep.subr.mxu0 %v563
        %1057 = vmatpush1.msra.mxu0 %v562
        %1058 = vmatprep.subr.mxu0 %v559
        %1059 = vmatpush1.msra.mxu0 %v558
        %1060 = vmatprep.subr.mxu0 %v555
        %1061 = vmatpush1.msra.mxu0 %v554
        %1062 = vmatprep.subr.mxu0 %v551
        %1063 = vmatpush1.msra.mxu0 %v550
        %1064 = vmatprep.subr.mxu0 %v547
        %1065 = vmatpush1.msra.mxu0 %v546
        %1066 = vmatprep.subr.mxu0 %v543
        %1067 = vmatpush1.msra.mxu0 %v542
        %1068 = vmatprep.subr.mxu0 %v539
        %1069 = vmatpush1.msra.mxu0 %v538
        %1070 = vmatprep.subr.mxu0 %v535
        %1071 = vmatpush1.msra.mxu0 %v534
        %1072 = vmatprep.subr.mxu0 %v531
        %1073 = vmatpush1.msra.mxu0 %v530
        %1074 = vmatprep.subr.mxu0 %v655
        %1075 = vmatpush2.msra.mxu0 %v654
        %1076 = vmatprep.subr.mxu0 %v651
        %1077 = vmatpush2.msra.mxu0 %v650
        %1078 = vmatprep.subr.mxu0 %v647
        %1079 = vmatpush2.msra.mxu0 %v646
        %1080 = vmatprep.subr.mxu0 %v643
        %1081 = vmatpush2.msra.mxu0 %v642
        %1082 = vmatprep.subr.mxu0 %v639
        %1083 = vmatpush2.msra.mxu0 %v638
        %1084 = vmatprep.subr.mxu0 %v635
        %1085 = vmatpush2.msra.mxu0 %v634
        %1086 = vmatprep.subr.mxu0 %v631
        %1087 = vmatpush2.msra.mxu0 %v630
        %1088 = vmatprep.subr.mxu0 %v627
        %1089 = vmatpush2.msra.mxu0 %v626
        %1090 = vmatprep.subr.mxu0 %v623
        %1091 = vmatpush2.msra.mxu0 %v622
        %1092 = vmatprep.subr.mxu0 %v619
        %1093 = vmatpush2.msra.mxu0 %v618
        %1094 = vmatprep.subr.mxu0 %v615
        %1095 = vmatpush2.msra.mxu0 %v614
        %1096 = vmatprep.subr.mxu0 %v611
        %1097 = vmatpush2.msra.mxu0 %v610
        %1098 = vmatprep.subr.mxu0 %v607
        %1099 = vmatpush2.msra.mxu0 %v606
        %1100 = vmatprep.subr.mxu0 %v603
        %1101 = vmatpush2.msra.mxu0 %v602
        %1102 = vmatprep.subr.mxu0 %v599
        %1103 = vmatpush2.msra.mxu0 %v598
        %1104 = vmatprep.subr.mxu0 %v595
        %1105 = vmatpush2.msra.mxu0 %v594
        %1106 = vmatprep.mubr.f32.mxu0 %v403
        %1107 = vmatmul.mubr.f32.gmra.mxu0 %v402
        %v1108 = vpop.f32.mrf.mxu0
        %v1109 = vadd.f32 0.0, %v1108
        %v1110 = vpop.f32.mrf.mxu0
        %v1111 = vadd.f32 0.0, %v1110
        %1112 = vmatprep.mubr.f32.mxu0 %v411
        %1113 = vmatmul.mubr.f32.gmra.mxu0 %v410
        %v1114 = vpop.f32.mrf.mxu0
        %v1115 = vadd.f32 0.0, %v1114
        %v1116 = vpop.f32.mrf.mxu0
        %v1117 = vadd.f32 0.0, %v1116
        %1118 = vmatprep.mubr.f32.mxu0 %v419
        %1119 = vmatmul.mubr.f32.gmra.mxu0 %v418
        %v1120 = vpop.f32.mrf.mxu0
        %v1121 = vadd.f32 0.0, %v1120
        %v1122 = vpop.f32.mrf.mxu0
        %v1123 = vadd.f32 0.0, %v1122
        %1124 = vmatprep.mubr.f32.mxu0 %v427
        %1125 = vmatmul.mubr.f32.gmra.mxu0 %v426
        %v1126 = vpop.f32.mrf.mxu0
        %v1127 = vadd.f32 0.0, %v1126
        %v1128 = vpop.f32.mrf.mxu0
        %v1129 = vadd.f32 0.0, %v1128
        %1130 = vmatprep.mubr.f32.mxu0 %v435
        %1131 = vmatmul.mubr.f32.gmra.mxu0 %v434
        %v1132 = vpop.f32.mrf.mxu0
        %v1133 = vadd.f32 0.0, %v1132
        %v1134 = vpop.f32.mrf.mxu0
        %v1135 = vadd.f32 0.0, %v1134
        %1136 = vmatprep.mubr.f32.mxu0 %v443
        %1137 = vmatmul.mubr.f32.gmra.mxu0 %v442
        %v1138 = vpop.f32.mrf.mxu0
        %v1139 = vadd.f32 0.0, %v1138
        %v1140 = vpop.f32.mrf.mxu0
        %v1141 = vadd.f32 0.0, %v1140
        %1142 = vmatprep.mubr.f32.mxu0 %v451
        %1143 = vmatmul.mubr.f32.gmra.mxu0 %v450
        %v1144 = vpop.f32.mrf.mxu0
        %v1145 = vadd.f32 0.0, %v1144
        %v1146 = vpop.f32.mrf.mxu0
        %v1147 = vadd.f32 0.0, %v1146
        %1148 = vmatprep.mubr.f32.mxu0 %v459
        %1149 = vmatmul.mubr.f32.gmra.mxu0 %v458
        %v1150 = vpop.f32.mrf.mxu0
        %v1151 = vadd.f32 0.0, %v1150
        %v1152 = vpop.f32.mrf.mxu0
        %v1153 = vadd.f32 0.0, %v1152
        %1154 = vmatprep.mubr.f32.mxu0 %v467
        %1155 = vmatmul.mubr.f32.gmra.mxu0 %v466
        %v1156 = vpop.f32.mrf.mxu0
        %v1157 = vadd.f32 0.0, %v1156
        %v1158 = vpop.f32.mrf.mxu0
        %v1159 = vadd.f32 0.0, %v1158
        %1160 = vmatprep.mubr.f32.mxu0 %v475
        %1161 = vmatmul.mubr.f32.gmra.mxu0 %v474
        %v1162 = vpop.f32.mrf.mxu0
        %v1163 = vadd.f32 0.0, %v1162
        %v1164 = vpop.f32.mrf.mxu0
        %v1165 = vadd.f32 0.0, %v1164
        %1166 = vmatprep.mubr.f32.mxu0 %v483
        %1167 = vmatmul.mubr.f32.gmra.mxu0 %v482
        %v1168 = vpop.f32.mrf.mxu0
        %v1169 = vadd.f32 0.0, %v1168
        %v1170 = vpop.f32.mrf.mxu0
        %v1171 = vadd.f32 0.0, %v1170
        %1172 = vmatprep.mubr.f32.mxu0 %v491
        %1173 = vmatmul.mubr.f32.gmra.mxu0 %v490
        %v1174 = vpop.f32.mrf.mxu0
        %v1175 = vadd.f32 0.0, %v1174
        %v1176 = vpop.f32.mrf.mxu0
        %v1177 = vadd.f32 0.0, %v1176
        %1178 = vmatprep.mubr.f32.mxu0 %v499
        %1179 = vmatmul.mubr.f32.gmra.mxu0 %v498
        %v1180 = vpop.f32.mrf.mxu0
        %v1181 = vadd.f32 0.0, %v1180
        %v1182 = vpop.f32.mrf.mxu0
        %v1183 = vadd.f32 0.0, %v1182
        %1184 = vmatprep.mubr.f32.mxu0 %v507
        %1185 = vmatmul.mubr.f32.gmra.mxu0 %v506
        %v1186 = vpop.f32.mrf.mxu0
        %v1187 = vadd.f32 0.0, %v1186
        %v1188 = vpop.f32.mrf.mxu0
        %v1189 = vadd.f32 0.0, %v1188
        %1190 = vmatprep.mubr.f32.mxu0 %v515
        %1191 = vmatmul.mubr.f32.gmra.mxu0 %v514
        %v1192 = vpop.f32.mrf.mxu0
        %v1193 = vadd.f32 0.0, %v1192
        %v1194 = vpop.f32.mrf.mxu0
        %v1195 = vadd.f32 0.0, %v1194
        %1196 = vmatprep.mubr.f32.mxu0 %v523
        %1197 = vmatmul.mubr.f32.gmra.mxu0 %v522
        %v1198 = vpop.f32.mrf.mxu0
        %v1199 = vadd.f32 0.0, %v1198
        %v1200 = vpop.f32.mrf.mxu0
        %v1201 = vadd.f32 0.0, %v1200
        %1202 = vdwg.mxu0
        %1203 = vmatprep.subr.mxu0 %v719
        %1204 = vmatpush1.msra.mxu0 %v718
        %1205 = vmatprep.subr.mxu0 %v715
        %1206 = vmatpush1.msra.mxu0 %v714
        %1207 = vmatprep.subr.mxu0 %v711
        %1208 = vmatpush1.msra.mxu0 %v710
        %1209 = vmatprep.subr.mxu0 %v707
        %1210 = vmatpush1.msra.mxu0 %v706
        %1211 = vmatprep.subr.mxu0 %v703
        %1212 = vmatpush1.msra.mxu0 %v702
        %1213 = vmatprep.subr.mxu0 %v699
        %1214 = vmatpush1.msra.mxu0 %v698
        %1215 = vmatprep.subr.mxu0 %v695
        %1216 = vmatpush1.msra.mxu0 %v694
        %1217 = vmatprep.subr.mxu0 %v691
        %1218 = vmatpush1.msra.mxu0 %v690
        %1219 = vmatprep.subr.mxu0 %v687
        %1220 = vmatpush1.msra.mxu0 %v686
        %1221 = vmatprep.subr.mxu0 %v683
        %1222 = vmatpush1.msra.mxu0 %v682
        %1223 = vmatprep.subr.mxu0 %v679
        %1224 = vmatpush1.msra.mxu0 %v678
        %1225 = vmatprep.subr.mxu0 %v675
        %1226 = vmatpush1.msra.mxu0 %v674
        %1227 = vmatprep.subr.mxu0 %v671
        %1228 = vmatpush1.msra.mxu0 %v670
        %1229 = vmatprep.subr.mxu0 %v667
        %1230 = vmatpush1.msra.mxu0 %v666
        %1231 = vmatprep.subr.mxu0 %v663
        %1232 = vmatpush1.msra.mxu0 %v662
        %1233 = vmatprep.subr.mxu0 %v659
        %1234 = vmatpush1.msra.mxu0 %v658
        %1235 = vmatprep.subr.mxu0 %v783
        %1236 = vmatpush2.msra.mxu0 %v782
        %1237 = vmatprep.subr.mxu0 %v779
        %1238 = vmatpush2.msra.mxu0 %v778
        %1239 = vmatprep.subr.mxu0 %v775
        %1240 = vmatpush2.msra.mxu0 %v774
        %1241 = vmatprep.subr.mxu0 %v771
        %1242 = vmatpush2.msra.mxu0 %v770
        %1243 = vmatprep.subr.mxu0 %v767
        %1244 = vmatpush2.msra.mxu0 %v766
        %1245 = vmatprep.subr.mxu0 %v763
        %1246 = vmatpush2.msra.mxu0 %v762
        %1247 = vmatprep.subr.mxu0 %v759
        %1248 = vmatpush2.msra.mxu0 %v758
        %1249 = vmatprep.subr.mxu0 %v755
        %1250 = vmatpush2.msra.mxu0 %v754
        %1251 = vmatprep.subr.mxu0 %v751
        %1252 = vmatpush2.msra.mxu0 %v750
        %1253 = vmatprep.subr.mxu0 %v747
        %1254 = vmatpush2.msra.mxu0 %v746
        %1255 = vmatprep.subr.mxu0 %v743
        %1256 = vmatpush2.msra.mxu0 %v742
        %1257 = vmatprep.subr.mxu0 %v739
        %1258 = vmatpush2.msra.mxu0 %v738
        %1259 = vmatprep.subr.mxu0 %v735
        %1260 = vmatpush2.msra.mxu0 %v734
        %1261 = vmatprep.subr.mxu0 %v731
        %1262 = vmatpush2.msra.mxu0 %v730
        %1263 = vmatprep.subr.mxu0 %v727
        %1264 = vmatpush2.msra.mxu0 %v726
        %1265 = vmatprep.subr.mxu0 %v723
        %1266 = vmatpush2.msra.mxu0 %v722
        %1267 = vmatprep.mubr.f32.mxu0 %v405
        %1268 = vmatmul.mubr.f32.gmra.mxu0 %v404
        %v1269 = vpop.f32.mrf.mxu0
        %v1270 = vadd.f32 %v1109, %v1269
        %v1271 = vpop.f32.mrf.mxu0
        %v1272 = vadd.f32 %v1111, %v1271
        %1273 = vmatprep.mubr.f32.mxu0 %v413
        %1274 = vmatmul.mubr.f32.gmra.mxu0 %v412
        %v1275 = vpop.f32.mrf.mxu0
        %v1276 = vadd.f32 %v1115, %v1275
        %v1277 = vpop.f32.mrf.mxu0
        %v1278 = vadd.f32 %v1117, %v1277
        %1279 = vmatprep.mubr.f32.mxu0 %v421
        %1280 = vmatmul.mubr.f32.gmra.mxu0 %v420
        %v1281 = vpop.f32.mrf.mxu0
        %v1282 = vadd.f32 %v1121, %v1281
        %v1283 = vpop.f32.mrf.mxu0
        %v1284 = vadd.f32 %v1123, %v1283
        %1285 = vmatprep.mubr.f32.mxu0 %v429
        %1286 = vmatmul.mubr.f32.gmra.mxu0 %v428
        %v1287 = vpop.f32.mrf.mxu0
        %v1288 = vadd.f32 %v1127, %v1287
        %v1289 = vpop.f32.mrf.mxu0
        %v1290 = vadd.f32 %v1129, %v1289
        %1291 = vmatprep.mubr.f32.mxu0 %v437
        %1292 = vmatmul.mubr.f32.gmra.mxu0 %v436
        %v1293 = vpop.f32.mrf.mxu0
        %v1294 = vadd.f32 %v1133, %v1293
        %v1295 = vpop.f32.mrf.mxu0
        %v1296 = vadd.f32 %v1135, %v1295
        %1297 = vmatprep.mubr.f32.mxu0 %v445
        %1298 = vmatmul.mubr.f32.gmra.mxu0 %v444
        %v1299 = vpop.f32.mrf.mxu0
        %v1300 = vadd.f32 %v1139, %v1299
        %v1301 = vpop.f32.mrf.mxu0
        %v1302 = vadd.f32 %v1141, %v1301
        %1303 = vmatprep.mubr.f32.mxu0 %v453
        %1304 = vmatmul.mubr.f32.gmra.mxu0 %v452
        %v1305 = vpop.f32.mrf.mxu0
        %v1306 = vadd.f32 %v1145, %v1305
        %v1307 = vpop.f32.mrf.mxu0
        %v1308 = vadd.f32 %v1147, %v1307
        %1309 = vmatprep.mubr.f32.mxu0 %v461
        %1310 = vmatmul.mubr.f32.gmra.mxu0 %v460
        %v1311 = vpop.f32.mrf.mxu0
        %v1312 = vadd.f32 %v1151, %v1311
        %v1313 = vpop.f32.mrf.mxu0
        %v1314 = vadd.f32 %v1153, %v1313
        %1315 = vmatprep.mubr.f32.mxu0 %v469
        %1316 = vmatmul.mubr.f32.gmra.mxu0 %v468
        %v1317 = vpop.f32.mrf.mxu0
        %v1318 = vadd.f32 %v1157, %v1317
        %v1319 = vpop.f32.mrf.mxu0
        %v1320 = vadd.f32 %v1159, %v1319
        %1321 = vmatprep.mubr.f32.mxu0 %v477
        %1322 = vmatmul.mubr.f32.gmra.mxu0 %v476
        %v1323 = vpop.f32.mrf.mxu0
        %v1324 = vadd.f32 %v1163, %v1323
        %v1325 = vpop.f32.mrf.mxu0
        %v1326 = vadd.f32 %v1165, %v1325
        %1327 = vmatprep.mubr.f32.mxu0 %v485
        %1328 = vmatmul.mubr.f32.gmra.mxu0 %v484
        %v1329 = vpop.f32.mrf.mxu0
        %v1330 = vadd.f32 %v1169, %v1329
        %v1331 = vpop.f32.mrf.mxu0
        %v1332 = vadd.f32 %v1171, %v1331
        %1333 = vmatprep.mubr.f32.mxu0 %v493
        %1334 = vmatmul.mubr.f32.gmra.mxu0 %v492
        %v1335 = vpop.f32.mrf.mxu0
        %v1336 = vadd.f32 %v1175, %v1335
        %v1337 = vpop.f32.mrf.mxu0
        %v1338 = vadd.f32 %v1177, %v1337
        %1339 = vmatprep.mubr.f32.mxu0 %v501
        %1340 = vmatmul.mubr.f32.gmra.mxu0 %v500
        %v1341 = vpop.f32.mrf.mxu0
        %v1342 = vadd.f32 %v1181, %v1341
        %v1343 = vpop.f32.mrf.mxu0
        %v1344 = vadd.f32 %v1183, %v1343
        %1345 = vmatprep.mubr.f32.mxu0 %v509
        %1346 = vmatmul.mubr.f32.gmra.mxu0 %v508
        %v1347 = vpop.f32.mrf.mxu0
        %v1348 = vadd.f32 %v1187, %v1347
        %v1349 = vpop.f32.mrf.mxu0
        %v1350 = vadd.f32 %v1189, %v1349
        %1351 = vmatprep.mubr.f32.mxu0 %v517
        %1352 = vmatmul.mubr.f32.gmra.mxu0 %v516
        %v1353 = vpop.f32.mrf.mxu0
        %v1354 = vadd.f32 %v1193, %v1353
        %v1355 = vpop.f32.mrf.mxu0
        %v1356 = vadd.f32 %v1195, %v1355
        %1357 = vmatprep.mubr.f32.mxu0 %v525
        %1358 = vmatmul.mubr.f32.gmra.mxu0 %v524
        %v1359 = vpop.f32.mrf.mxu0
        %v1360 = vadd.f32 %v1199, %v1359
        %v1361 = vpop.f32.mrf.mxu0
        %v1362 = vadd.f32 %v1201, %v1361
        %1363 = vdwg.mxu0
        %1364 = vmatprep.subr.mxu0 %v847
        %1365 = vmatpush1.msra.mxu0 %v846
        %1366 = vmatprep.subr.mxu0 %v843
        %1367 = vmatpush1.msra.mxu0 %v842
        %1368 = vmatprep.subr.mxu0 %v839
        %1369 = vmatpush1.msra.mxu0 %v838
        %1370 = vmatprep.subr.mxu0 %v835
        %1371 = vmatpush1.msra.mxu0 %v834
        %1372 = vmatprep.subr.mxu0 %v831
        %1373 = vmatpush1.msra.mxu0 %v830
        %1374 = vmatprep.subr.mxu0 %v827
        %1375 = vmatpush1.msra.mxu0 %v826
        %1376 = vmatprep.subr.mxu0 %v823
        %1377 = vmatpush1.msra.mxu0 %v822
        %1378 = vmatprep.subr.mxu0 %v819
        %1379 = vmatpush1.msra.mxu0 %v818
        %1380 = vmatprep.subr.mxu0 %v815
        %1381 = vmatpush1.msra.mxu0 %v814
        %1382 = vmatprep.subr.mxu0 %v811
        %1383 = vmatpush1.msra.mxu0 %v810
        %1384 = vmatprep.subr.mxu0 %v807
        %1385 = vmatpush1.msra.mxu0 %v806
        %1386 = vmatprep.subr.mxu0 %v803
        %1387 = vmatpush1.msra.mxu0 %v802
        %1388 = vmatprep.subr.mxu0 %v799
        %1389 = vmatpush1.msra.mxu0 %v798
        %1390 = vmatprep.subr.mxu0 %v795
        %1391 = vmatpush1.msra.mxu0 %v794
        %1392 = vmatprep.subr.mxu0 %v791
        %1393 = vmatpush1.msra.mxu0 %v790
        %1394 = vmatprep.subr.mxu0 %v787
        %1395 = vmatpush1.msra.mxu0 %v786
        %1396 = vmatprep.subr.mxu0 %v911
        %1397 = vmatpush2.msra.mxu0 %v910
        %1398 = vmatprep.subr.mxu0 %v907
        %1399 = vmatpush2.msra.mxu0 %v906
        %1400 = vmatprep.subr.mxu0 %v903
        %1401 = vmatpush2.msra.mxu0 %v902
        %1402 = vmatprep.subr.mxu0 %v899
        %1403 = vmatpush2.msra.mxu0 %v898
        %1404 = vmatprep.subr.mxu0 %v895
        %1405 = vmatpush2.msra.mxu0 %v894
        %1406 = vmatprep.subr.mxu0 %v891
        %1407 = vmatpush2.msra.mxu0 %v890
        %1408 = vmatprep.subr.mxu0 %v887
        %1409 = vmatpush2.msra.mxu0 %v886
        %1410 = vmatprep.subr.mxu0 %v883
        %1411 = vmatpush2.msra.mxu0 %v882
        %1412 = vmatprep.subr.mxu0 %v879
        %1413 = vmatpush2.msra.mxu0 %v878
        %1414 = vmatprep.subr.mxu0 %v875
        %1415 = vmatpush2.msra.mxu0 %v874
        %1416 = vmatprep.subr.mxu0 %v871
        %1417 = vmatpush2.msra.mxu0 %v870
        %1418 = vmatprep.subr.mxu0 %v867
        %1419 = vmatpush2.msra.mxu0 %v866
        %1420 = vmatprep.subr.mxu0 %v863
        %1421 = vmatpush2.msra.mxu0 %v862
        %1422 = vmatprep.subr.mxu0 %v859
        %1423 = vmatpush2.msra.mxu0 %v858
        %1424 = vmatprep.subr.mxu0 %v855
        %1425 = vmatpush2.msra.mxu0 %v854
        %1426 = vmatprep.subr.mxu0 %v851
        %1427 = vmatpush2.msra.mxu0 %v850
        %1428 = vmatprep.mubr.f32.mxu0 %v407
        %1429 = vmatmul.mubr.f32.gmra.mxu0 %v406
        %v1430 = vpop.f32.mrf.mxu0
        %v1431 = vadd.f32 %v1270, %v1430
        %v1432 = vpop.f32.mrf.mxu0
        %v1433 = vadd.f32 %v1272, %v1432
        %1434 = vmatprep.mubr.f32.mxu0 %v415
        %1435 = vmatmul.mubr.f32.gmra.mxu0 %v414
        %v1436 = vpop.f32.mrf.mxu0
        %v1437 = vadd.f32 %v1276, %v1436
        %v1438 = vpop.f32.mrf.mxu0
        %v1439 = vadd.f32 %v1278, %v1438
        %1440 = vmatprep.mubr.f32.mxu0 %v423
        %1441 = vmatmul.mubr.f32.gmra.mxu0 %v422
        %v1442 = vpop.f32.mrf.mxu0
        %v1443 = vadd.f32 %v1282, %v1442
        %v1444 = vpop.f32.mrf.mxu0
        %v1445 = vadd.f32 %v1284, %v1444
        %1446 = vmatprep.mubr.f32.mxu0 %v431
        %1447 = vmatmul.mubr.f32.gmra.mxu0 %v430
        %v1448 = vpop.f32.mrf.mxu0
        %v1449 = vadd.f32 %v1288, %v1448
        %v1450 = vpop.f32.mrf.mxu0
        %v1451 = vadd.f32 %v1290, %v1450
        %1452 = vmatprep.mubr.f32.mxu0 %v439
        %1453 = vmatmul.mubr.f32.gmra.mxu0 %v438
        %v1454 = vpop.f32.mrf.mxu0
        %v1455 = vadd.f32 %v1294, %v1454
        %v1456 = vpop.f32.mrf.mxu0
        %v1457 = vadd.f32 %v1296, %v1456
        %1458 = vmatprep.mubr.f32.mxu0 %v447
        %1459 = vmatmul.mubr.f32.gmra.mxu0 %v446
        %v1460 = vpop.f32.mrf.mxu0
        %v1461 = vadd.f32 %v1300, %v1460
        %v1462 = vpop.f32.mrf.mxu0
        %v1463 = vadd.f32 %v1302, %v1462
        %1464 = vmatprep.mubr.f32.mxu0 %v455
        %1465 = vmatmul.mubr.f32.gmra.mxu0 %v454
        %v1466 = vpop.f32.mrf.mxu0
        %v1467 = vadd.f32 %v1306, %v1466
        %v1468 = vpop.f32.mrf.mxu0
        %v1469 = vadd.f32 %v1308, %v1468
        %1470 = vmatprep.mubr.f32.mxu0 %v463
        %1471 = vmatmul.mubr.f32.gmra.mxu0 %v462
        %v1472 = vpop.f32.mrf.mxu0
        %v1473 = vadd.f32 %v1312, %v1472
        %v1474 = vpop.f32.mrf.mxu0
        %v1475 = vadd.f32 %v1314, %v1474
        %1476 = vmatprep.mubr.f32.mxu0 %v471
        %1477 = vmatmul.mubr.f32.gmra.mxu0 %v470
        %v1478 = vpop.f32.mrf.mxu0
        %v1479 = vadd.f32 %v1318, %v1478
        %v1480 = vpop.f32.mrf.mxu0
        %v1481 = vadd.f32 %v1320, %v1480
        %1482 = vmatprep.mubr.f32.mxu0 %v479
        %1483 = vmatmul.mubr.f32.gmra.mxu0 %v478
        %v1484 = vpop.f32.mrf.mxu0
        %v1485 = vadd.f32 %v1324, %v1484
        %v1486 = vpop.f32.mrf.mxu0
        %v1487 = vadd.f32 %v1326, %v1486
        %1488 = vmatprep.mubr.f32.mxu0 %v487
        %1489 = vmatmul.mubr.f32.gmra.mxu0 %v486
        %v1490 = vpop.f32.mrf.mxu0
        %v1491 = vadd.f32 %v1330, %v1490
        %v1492 = vpop.f32.mrf.mxu0
        %v1493 = vadd.f32 %v1332, %v1492
        %1494 = vmatprep.mubr.f32.mxu0 %v495
        %1495 = vmatmul.mubr.f32.gmra.mxu0 %v494
        %v1496 = vpop.f32.mrf.mxu0
        %v1497 = vadd.f32 %v1336, %v1496
        %v1498 = vpop.f32.mrf.mxu0
        %v1499 = vadd.f32 %v1338, %v1498
        %1500 = vmatprep.mubr.f32.mxu0 %v503
        %1501 = vmatmul.mubr.f32.gmra.mxu0 %v502
        %v1502 = vpop.f32.mrf.mxu0
        %v1503 = vadd.f32 %v1342, %v1502
        %v1504 = vpop.f32.mrf.mxu0
        %v1505 = vadd.f32 %v1344, %v1504
        %1506 = vmatprep.mubr.f32.mxu0 %v511
        %1507 = vmatmul.mubr.f32.gmra.mxu0 %v510
        %v1508 = vpop.f32.mrf.mxu0
        %v1509 = vadd.f32 %v1348, %v1508
        %v1510 = vpop.f32.mrf.mxu0
        %v1511 = vadd.f32 %v1350, %v1510
        %1512 = vmatprep.mubr.f32.mxu0 %v519
        %1513 = vmatmul.mubr.f32.gmra.mxu0 %v518
        %v1514 = vpop.f32.mrf.mxu0
        %v1515 = vadd.f32 %v1354, %v1514
        %v1516 = vpop.f32.mrf.mxu0
        %v1517 = vadd.f32 %v1356, %v1516
        %1518 = vmatprep.mubr.f32.mxu0 %v527
        %1519 = vmatmul.mubr.f32.gmra.mxu0 %v526
        %v1520 = vpop.f32.mrf.mxu0
        %v1521 = vadd.f32 %v1360, %v1520
        %v1522 = vpop.f32.mrf.mxu0
        %v1523 = vadd.f32 %v1362, %v1522
        %1524 = vdwg.mxu0
        %1525 = vmatprep.subr.mxu0 %v975
        %1526 = vmatpush1.msra.mxu0 %v974
        %1527 = vmatprep.subr.mxu0 %v971
        %1528 = vmatpush1.msra.mxu0 %v970
        %1529 = vmatprep.subr.mxu0 %v967
        %1530 = vmatpush1.msra.mxu0 %v966
        %1531 = vmatprep.subr.mxu0 %v963
        %1532 = vmatpush1.msra.mxu0 %v962
        %1533 = vmatprep.subr.mxu0 %v959
        %1534 = vmatpush1.msra.mxu0 %v958
        %1535 = vmatprep.subr.mxu0 %v955
        %1536 = vmatpush1.msra.mxu0 %v954
        %1537 = vmatprep.subr.mxu0 %v951
        %1538 = vmatpush1.msra.mxu0 %v950
        %1539 = vmatprep.subr.mxu0 %v947
        %1540 = vmatpush1.msra.mxu0 %v946
        %1541 = vmatprep.subr.mxu0 %v943
        %1542 = vmatpush1.msra.mxu0 %v942
        %1543 = vmatprep.subr.mxu0 %v939
        %1544 = vmatpush1.msra.mxu0 %v938
        %1545 = vmatprep.subr.mxu0 %v935
        %1546 = vmatpush1.msra.mxu0 %v934
        %1547 = vmatprep.subr.mxu0 %v931
        %1548 = vmatpush1.msra.mxu0 %v930
        %1549 = vmatprep.subr.mxu0 %v927
        %1550 = vmatpush1.msra.mxu0 %v926
        %1551 = vmatprep.subr.mxu0 %v923
        %1552 = vmatpush1.msra.mxu0 %v922
        %1553 = vmatprep.subr.mxu0 %v919
        %1554 = vmatpush1.msra.mxu0 %v918
        %1555 = vmatprep.subr.mxu0 %v915
        %1556 = vmatpush1.msra.mxu0 %v914
        %1557 = vmatprep.subr.mxu0 %v1039
        %1558 = vmatpush2.msra.mxu0 %v1038
        %1559 = vmatprep.subr.mxu0 %v1035
        %1560 = vmatpush2.msra.mxu0 %v1034
        %1561 = vmatprep.subr.mxu0 %v1031
        %1562 = vmatpush2.msra.mxu0 %v1030
        %1563 = vmatprep.subr.mxu0 %v1027
        %1564 = vmatpush2.msra.mxu0 %v1026
        %1565 = vmatprep.subr.mxu0 %v1023
        %1566 = vmatpush2.msra.mxu0 %v1022
        %1567 = vmatprep.subr.mxu0 %v1019
        %1568 = vmatpush2.msra.mxu0 %v1018
        %1569 = vmatprep.subr.mxu0 %v1015
        %1570 = vmatpush2.msra.mxu0 %v1014
        %1571 = vmatprep.subr.mxu0 %v1011
        %1572 = vmatpush2.msra.mxu0 %v1010
        %1573 = vmatprep.subr.mxu0 %v1007
        %1574 = vmatpush2.msra.mxu0 %v1006
        %1575 = vmatprep.subr.mxu0 %v1003
        %1576 = vmatpush2.msra.mxu0 %v1002
        %1577 = vmatprep.subr.mxu0 %v999
        %1578 = vmatpush2.msra.mxu0 %v998
        %1579 = vmatprep.subr.mxu0 %v995
        %1580 = vmatpush2.msra.mxu0 %v994
        %1581 = vmatprep.subr.mxu0 %v991
        %1582 = vmatpush2.msra.mxu0 %v990
        %1583 = vmatprep.subr.mxu0 %v987
        %1584 = vmatpush2.msra.mxu0 %v986
        %1585 = vmatprep.subr.mxu0 %v983
        %1586 = vmatpush2.msra.mxu0 %v982
        %1587 = vmatprep.subr.mxu0 %v979
        %1588 = vmatpush2.msra.mxu0 %v978
        %1589 = vmatprep.mubr.f32.mxu0 %v409
        %1590 = vmatmul.mubr.f32.gmra.mxu0 %v408
        %v1591 = vpop.f32.mrf.mxu0
        %v1592 = vadd.f32 %v1431, %v1591
        %v1593 = vpop.f32.mrf.mxu0
        %v1594 = vadd.f32 %v1433, %v1593
        %1595 = vmatprep.mubr.f32.mxu0 %v417
        %1596 = vmatmul.mubr.f32.gmra.mxu0 %v416
        %v1597 = vpop.f32.mrf.mxu0
        %v1598 = vadd.f32 %v1437, %v1597
        %v1599 = vpop.f32.mrf.mxu0
        %v1600 = vadd.f32 %v1439, %v1599
        %1601 = vmatprep.mubr.f32.mxu0 %v425
        %1602 = vmatmul.mubr.f32.gmra.mxu0 %v424
        %v1603 = vpop.f32.mrf.mxu0
        %v1604 = vadd.f32 %v1443, %v1603
        %v1605 = vpop.f32.mrf.mxu0
        %v1606 = vadd.f32 %v1445, %v1605
        %1607 = vmatprep.mubr.f32.mxu0 %v433
        %1608 = vmatmul.mubr.f32.gmra.mxu0 %v432
        %v1609 = vpop.f32.mrf.mxu0
        %v1610 = vadd.f32 %v1449, %v1609
        %v1611 = vpop.f32.mrf.mxu0
        %v1612 = vadd.f32 %v1451, %v1611
        %1613 = vmatprep.mubr.f32.mxu0 %v441
        %1614 = vmatmul.mubr.f32.gmra.mxu0 %v440
        %v1615 = vpop.f32.mrf.mxu0
        %v1616 = vadd.f32 %v1455, %v1615
        %v1617 = vpop.f32.mrf.mxu0
        %v1618 = vadd.f32 %v1457, %v1617
        %1619 = vmatprep.mubr.f32.mxu0 %v449
        %1620 = vmatmul.mubr.f32.gmra.mxu0 %v448
        %v1621 = vpop.f32.mrf.mxu0
        %v1622 = vadd.f32 %v1461, %v1621
        %v1623 = vpop.f32.mrf.mxu0
        %v1624 = vadd.f32 %v1463, %v1623
        %1625 = vmatprep.mubr.f32.mxu0 %v457
        %1626 = vmatmul.mubr.f32.gmra.mxu0 %v456
        %v1627 = vpop.f32.mrf.mxu0
        %v1628 = vadd.f32 %v1467, %v1627
        %v1629 = vpop.f32.mrf.mxu0
        %v1630 = vadd.f32 %v1469, %v1629
        %1631 = vmatprep.mubr.f32.mxu0 %v465
        %1632 = vmatmul.mubr.f32.gmra.mxu0 %v464
        %v1633 = vpop.f32.mrf.mxu0
        %v1634 = vadd.f32 %v1473, %v1633
        %v1635 = vpop.f32.mrf.mxu0
        %v1636 = vadd.f32 %v1475, %v1635
        %1637 = vmatprep.mubr.f32.mxu0 %v473
        %1638 = vmatmul.mubr.f32.gmra.mxu0 %v472
        %v1639 = vpop.f32.mrf.mxu0
        %v1640 = vadd.f32 %v1479, %v1639
        %v1641 = vpop.f32.mrf.mxu0
        %v1642 = vadd.f32 %v1481, %v1641
        %1643 = vmatprep.mubr.f32.mxu0 %v481
        %1644 = vmatmul.mubr.f32.gmra.mxu0 %v480
        %v1645 = vpop.f32.mrf.mxu0
        %v1646 = vadd.f32 %v1485, %v1645
        %v1647 = vpop.f32.mrf.mxu0
        %v1648 = vadd.f32 %v1487, %v1647
        %1649 = vmatprep.mubr.f32.mxu0 %v489
        %1650 = vmatmul.mubr.f32.gmra.mxu0 %v488
        %v1651 = vpop.f32.mrf.mxu0
        %v1652 = vadd.f32 %v1491, %v1651
        %v1653 = vpop.f32.mrf.mxu0
        %v1654 = vadd.f32 %v1493, %v1653
        %1655 = vmatprep.mubr.f32.mxu0 %v497
        %1656 = vmatmul.mubr.f32.gmra.mxu0 %v496
        %v1657 = vpop.f32.mrf.mxu0
        %v1658 = vadd.f32 %v1497, %v1657
        %v1659 = vpop.f32.mrf.mxu0
        %v1660 = vadd.f32 %v1499, %v1659
        %1661 = vmatprep.mubr.f32.mxu0 %v505
        %1662 = vmatmul.mubr.f32.gmra.mxu0 %v504
        %v1663 = vpop.f32.mrf.mxu0
        %v1664 = vadd.f32 %v1503, %v1663
        %v1665 = vpop.f32.mrf.mxu0
        %v1666 = vadd.f32 %v1505, %v1665
        %1667 = vmatprep.mubr.f32.mxu0 %v513
        %1668 = vmatmul.mubr.f32.gmra.mxu0 %v512
        %v1669 = vpop.f32.mrf.mxu0
        %v1670 = vadd.f32 %v1509, %v1669
        %v1671 = vpop.f32.mrf.mxu0
        %v1672 = vadd.f32 %v1511, %v1671
        %1673 = vmatprep.mubr.f32.mxu0 %v521
        %1674 = vmatmul.mubr.f32.gmra.mxu0 %v520
        %v1675 = vpop.f32.mrf.mxu0
        %v1676 = vadd.f32 %v1515, %v1675
        %v1677 = vpop.f32.mrf.mxu0
        %v1678 = vadd.f32 %v1517, %v1677
        %1679 = vmatprep.mubr.f32.mxu0 %v529
        %1680 = vmatmul.mubr.f32.gmra.mxu0 %v528
        %v1681 = vpop.f32.mrf.mxu0
        %v1682 = vadd.f32 %v1521, %v1681
        %v1683 = vpop.f32.mrf.mxu0
        %v1684 = vadd.f32 %v1523, %v1683
        %1685 = vdwg.mxu0
        %1686 = vmatprep.subr.mxu0 %v593
        %1687 = vmatpush1.msra.mxu0 %v592
        %1688 = vmatprep.subr.mxu0 %v589
        %1689 = vmatpush1.msra.mxu0 %v588
        %1690 = vmatprep.subr.mxu0 %v585
        %1691 = vmatpush1.msra.mxu0 %v584
        %1692 = vmatprep.subr.mxu0 %v581
        %1693 = vmatpush1.msra.mxu0 %v580
        %1694 = vmatprep.subr.mxu0 %v577
        %1695 = vmatpush1.msra.mxu0 %v576
        %1696 = vmatprep.subr.mxu0 %v573
        %1697 = vmatpush1.msra.mxu0 %v572
        %1698 = vmatprep.subr.mxu0 %v569
        %1699 = vmatpush1.msra.mxu0 %v568
        %1700 = vmatprep.subr.mxu0 %v565
        %1701 = vmatpush1.msra.mxu0 %v564
        %1702 = vmatprep.subr.mxu0 %v561
        %1703 = vmatpush1.msra.mxu0 %v560
        %1704 = vmatprep.subr.mxu0 %v557
        %1705 = vmatpush1.msra.mxu0 %v556
        %1706 = vmatprep.subr.mxu0 %v553
        %1707 = vmatpush1.msra.mxu0 %v552
        %1708 = vmatprep.subr.mxu0 %v549
        %1709 = vmatpush1.msra.mxu0 %v548
        %1710 = vmatprep.subr.mxu0 %v545
        %1711 = vmatpush1.msra.mxu0 %v544
        %1712 = vmatprep.subr.mxu0 %v541
        %1713 = vmatpush1.msra.mxu0 %v540
        %1714 = vmatprep.subr.mxu0 %v537
        %1715 = vmatpush1.msra.mxu0 %v536
        %1716 = vmatprep.subr.mxu0 %v533
        %1717 = vmatpush1.msra.mxu0 %v532
        %1718 = vmatprep.subr.mxu0 %v657
        %1719 = vmatpush2.msra.mxu0 %v656
        %1720 = vmatprep.subr.mxu0 %v653
        %1721 = vmatpush2.msra.mxu0 %v652
        %1722 = vmatprep.subr.mxu0 %v649
        %1723 = vmatpush2.msra.mxu0 %v648
        %1724 = vmatprep.subr.mxu0 %v645
        %1725 = vmatpush2.msra.mxu0 %v644
        %1726 = vmatprep.subr.mxu0 %v641
        %1727 = vmatpush2.msra.mxu0 %v640
        %1728 = vmatprep.subr.mxu0 %v637
        %1729 = vmatpush2.msra.mxu0 %v636
        %1730 = vmatprep.subr.mxu0 %v633
        %1731 = vmatpush2.msra.mxu0 %v632
        %1732 = vmatprep.subr.mxu0 %v629
        %1733 = vmatpush2.msra.mxu0 %v628
        %1734 = vmatprep.subr.mxu0 %v625
        %1735 = vmatpush2.msra.mxu0 %v624
        %1736 = vmatprep.subr.mxu0 %v621
        %1737 = vmatpush2.msra.mxu0 %v620
        %1738 = vmatprep.subr.mxu0 %v617
        %1739 = vmatpush2.msra.mxu0 %v616
        %1740 = vmatprep.subr.mxu0 %v613
        %1741 = vmatpush2.msra.mxu0 %v612
        %1742 = vmatprep.subr.mxu0 %v609
        %1743 = vmatpush2.msra.mxu0 %v608
        %1744 = vmatprep.subr.mxu0 %v605
        %1745 = vmatpush2.msra.mxu0 %v604
        %1746 = vmatprep.subr.mxu0 %v601
        %1747 = vmatpush2.msra.mxu0 %v600
        %1748 = vmatprep.subr.mxu0 %v597
        %1749 = vmatpush2.msra.mxu0 %v596
        %1750 = vmatprep.mubr.f32.mxu0 %v403
        %1751 = vmatmul.mubr.f32.gmra.mxu0 %v402
        %v1752 = vpop.f32.mrf.mxu0
        %v1753 = vadd.f32 0.0, %v1752
        %v1754 = vpop.f32.mrf.mxu0
        %v1755 = vadd.f32 0.0, %v1754
        %1756 = vmatprep.mubr.f32.mxu0 %v411
        %1757 = vmatmul.mubr.f32.gmra.mxu0 %v410
        %v1758 = vpop.f32.mrf.mxu0
        %v1759 = vadd.f32 0.0, %v1758
        %v1760 = vpop.f32.mrf.mxu0
        %v1761 = vadd.f32 0.0, %v1760
        %1762 = vmatprep.mubr.f32.mxu0 %v419
        %1763 = vmatmul.mubr.f32.gmra.mxu0 %v418
        %v1764 = vpop.f32.mrf.mxu0
        %v1765 = vadd.f32 0.0, %v1764
        %v1766 = vpop.f32.mrf.mxu0
        %v1767 = vadd.f32 0.0, %v1766
        %1768 = vmatprep.mubr.f32.mxu0 %v427
        %1769 = vmatmul.mubr.f32.gmra.mxu0 %v426
        %v1770 = vpop.f32.mrf.mxu0
        %v1771 = vadd.f32 0.0, %v1770
        %v1772 = vpop.f32.mrf.mxu0
        %v1773 = vadd.f32 0.0, %v1772
        %1774 = vmatprep.mubr.f32.mxu0 %v435
        %1775 = vmatmul.mubr.f32.gmra.mxu0 %v434
        %v1776 = vpop.f32.mrf.mxu0
        %v1777 = vadd.f32 0.0, %v1776
        %v1778 = vpop.f32.mrf.mxu0
        %v1779 = vadd.f32 0.0, %v1778
        %1780 = vmatprep.mubr.f32.mxu0 %v443
        %1781 = vmatmul.mubr.f32.gmra.mxu0 %v442
        %v1782 = vpop.f32.mrf.mxu0
        %v1783 = vadd.f32 0.0, %v1782
        %v1784 = vpop.f32.mrf.mxu0
        %v1785 = vadd.f32 0.0, %v1784
        %1786 = vmatprep.mubr.f32.mxu0 %v451
        %1787 = vmatmul.mubr.f32.gmra.mxu0 %v450
        %v1788 = vpop.f32.mrf.mxu0
        %v1789 = vadd.f32 0.0, %v1788
        %v1790 = vpop.f32.mrf.mxu0
        %v1791 = vadd.f32 0.0, %v1790
        %1792 = vmatprep.mubr.f32.mxu0 %v459
        %1793 = vmatmul.mubr.f32.gmra.mxu0 %v458
        %v1794 = vpop.f32.mrf.mxu0
        %v1795 = vadd.f32 0.0, %v1794
        %v1796 = vpop.f32.mrf.mxu0
        %v1797 = vadd.f32 0.0, %v1796
        %1798 = vmatprep.mubr.f32.mxu0 %v467
        %1799 = vmatmul.mubr.f32.gmra.mxu0 %v466
        %v1800 = vpop.f32.mrf.mxu0
        %v1801 = vadd.f32 0.0, %v1800
        %v1802 = vpop.f32.mrf.mxu0
        %v1803 = vadd.f32 0.0, %v1802
        %1804 = vmatprep.mubr.f32.mxu0 %v475
        %1805 = vmatmul.mubr.f32.gmra.mxu0 %v474
        %v1806 = vpop.f32.mrf.mxu0
        %v1807 = vadd.f32 0.0, %v1806
        %v1808 = vpop.f32.mrf.mxu0
        %v1809 = vadd.f32 0.0, %v1808
        %1810 = vmatprep.mubr.f32.mxu0 %v483
        %1811 = vmatmul.mubr.f32.gmra.mxu0 %v482
        %v1812 = vpop.f32.mrf.mxu0
        %v1813 = vadd.f32 0.0, %v1812
        %v1814 = vpop.f32.mrf.mxu0
        %v1815 = vadd.f32 0.0, %v1814
        %1816 = vmatprep.mubr.f32.mxu0 %v491
        %1817 = vmatmul.mubr.f32.gmra.mxu0 %v490
        %v1818 = vpop.f32.mrf.mxu0
        %v1819 = vadd.f32 0.0, %v1818
        %v1820 = vpop.f32.mrf.mxu0
        %v1821 = vadd.f32 0.0, %v1820
        %1822 = vmatprep.mubr.f32.mxu0 %v499
        %1823 = vmatmul.mubr.f32.gmra.mxu0 %v498
        %v1824 = vpop.f32.mrf.mxu0
        %v1825 = vadd.f32 0.0, %v1824
        %v1826 = vpop.f32.mrf.mxu0
        %v1827 = vadd.f32 0.0, %v1826
        %1828 = vmatprep.mubr.f32.mxu0 %v507
        %1829 = vmatmul.mubr.f32.gmra.mxu0 %v506
        %v1830 = vpop.f32.mrf.mxu0
        %v1831 = vadd.f32 0.0, %v1830
        %v1832 = vpop.f32.mrf.mxu0
        %v1833 = vadd.f32 0.0, %v1832
        %1834 = vmatprep.mubr.f32.mxu0 %v515
        %1835 = vmatmul.mubr.f32.gmra.mxu0 %v514
        %v1836 = vpop.f32.mrf.mxu0
        %v1837 = vadd.f32 0.0, %v1836
        %v1838 = vpop.f32.mrf.mxu0
        %v1839 = vadd.f32 0.0, %v1838
        %1840 = vmatprep.mubr.f32.mxu0 %v523
        %1841 = vmatmul.mubr.f32.gmra.mxu0 %v522
        %v1842 = vpop.f32.mrf.mxu0
        %v1843 = vadd.f32 0.0, %v1842
        %v1844 = vpop.f32.mrf.mxu0
        %v1845 = vadd.f32 0.0, %v1844
        %1846 = vdwg.mxu0
        %1847 = vmatprep.subr.mxu0 %v721
        %1848 = vmatpush1.msra.mxu0 %v720
        %1849 = vmatprep.subr.mxu0 %v717
        %1850 = vmatpush1.msra.mxu0 %v716
        %1851 = vmatprep.subr.mxu0 %v713
        %1852 = vmatpush1.msra.mxu0 %v712
        %1853 = vmatprep.subr.mxu0 %v709
        %1854 = vmatpush1.msra.mxu0 %v708
        %1855 = vmatprep.subr.mxu0 %v705
        %1856 = vmatpush1.msra.mxu0 %v704
        %1857 = vmatprep.subr.mxu0 %v701
        %1858 = vmatpush1.msra.mxu0 %v700
        %1859 = vmatprep.subr.mxu0 %v697
        %1860 = vmatpush1.msra.mxu0 %v696
        %1861 = vmatprep.subr.mxu0 %v693
        %1862 = vmatpush1.msra.mxu0 %v692
        %1863 = vmatprep.subr.mxu0 %v689
        %1864 = vmatpush1.msra.mxu0 %v688
        %1865 = vmatprep.subr.mxu0 %v685
        %1866 = vmatpush1.msra.mxu0 %v684
        %1867 = vmatprep.subr.mxu0 %v681
        %1868 = vmatpush1.msra.mxu0 %v680
        %1869 = vmatprep.subr.mxu0 %v677
        %1870 = vmatpush1.msra.mxu0 %v676
        %1871 = vmatprep.subr.mxu0 %v673
        %1872 = vmatpush1.msra.mxu0 %v672
        %1873 = vmatprep.subr.mxu0 %v669
        %1874 = vmatpush1.msra.mxu0 %v668
        %1875 = vmatprep.subr.mxu0 %v665
        %1876 = vmatpush1.msra.mxu0 %v664
        %1877 = vmatprep.subr.mxu0 %v661
        %1878 = vmatpush1.msra.mxu0 %v660
        %1879 = vmatprep.subr.mxu0 %v785
        %1880 = vmatpush2.msra.mxu0 %v784
        %1881 = vmatprep.subr.mxu0 %v781
        %1882 = vmatpush2.msra.mxu0 %v780
        %1883 = vmatprep.subr.mxu0 %v777
        %1884 = vmatpush2.msra.mxu0 %v776
        %1885 = vmatprep.subr.mxu0 %v773
        %1886 = vmatpush2.msra.mxu0 %v772
        %1887 = vmatprep.subr.mxu0 %v769
        %1888 = vmatpush2.msra.mxu0 %v768
        %1889 = vmatprep.subr.mxu0 %v765
        %1890 = vmatpush2.msra.mxu0 %v764
        %1891 = vmatprep.subr.mxu0 %v761
        %1892 = vmatpush2.msra.mxu0 %v760
        %1893 = vmatprep.subr.mxu0 %v757
        %1894 = vmatpush2.msra.mxu0 %v756
        %1895 = vmatprep.subr.mxu0 %v753
        %1896 = vmatpush2.msra.mxu0 %v752
        %1897 = vmatprep.subr.mxu0 %v749
        %1898 = vmatpush2.msra.mxu0 %v748
        %1899 = vmatprep.subr.mxu0 %v745
        %1900 = vmatpush2.msra.mxu0 %v744
        %1901 = vmatprep.subr.mxu0 %v741
        %1902 = vmatpush2.msra.mxu0 %v740
        %1903 = vmatprep.subr.mxu0 %v737
        %1904 = vmatpush2.msra.mxu0 %v736
        %1905 = vmatprep.subr.mxu0 %v733
        %1906 = vmatpush2.msra.mxu0 %v732
        %1907 = vmatprep.subr.mxu0 %v729
        %1908 = vmatpush2.msra.mxu0 %v728
        %1909 = vmatprep.subr.mxu0 %v725
        %1910 = vmatpush2.msra.mxu0 %v724
        %1911 = vmatprep.mubr.f32.mxu0 %v405
        %1912 = vmatmul.mubr.f32.gmra.mxu0 %v404
        %v1913 = vpop.f32.mrf.mxu0
        %v1914 = vadd.f32 %v1753, %v1913
        %v1915 = vpop.f32.mrf.mxu0
        %v1916 = vadd.f32 %v1755, %v1915
        %1917 = vmatprep.mubr.f32.mxu0 %v413
        %1918 = vmatmul.mubr.f32.gmra.mxu0 %v412
        %v1919 = vpop.f32.mrf.mxu0
        %v1920 = vadd.f32 %v1759, %v1919
        %v1921 = vpop.f32.mrf.mxu0
        %v1922 = vadd.f32 %v1761, %v1921
        %1923 = vmatprep.mubr.f32.mxu0 %v421
        %1924 = vmatmul.mubr.f32.gmra.mxu0 %v420
        %v1925 = vpop.f32.mrf.mxu0
        %v1926 = vadd.f32 %v1765, %v1925
        %v1927 = vpop.f32.mrf.mxu0
        %v1928 = vadd.f32 %v1767, %v1927
        %1929 = vmatprep.mubr.f32.mxu0 %v429
        %1930 = vmatmul.mubr.f32.gmra.mxu0 %v428
        %v1931 = vpop.f32.mrf.mxu0
        %v1932 = vadd.f32 %v1771, %v1931
        %v1933 = vpop.f32.mrf.mxu0
        %v1934 = vadd.f32 %v1773, %v1933
        %1935 = vmatprep.mubr.f32.mxu0 %v437
        %1936 = vmatmul.mubr.f32.gmra.mxu0 %v436
        %v1937 = vpop.f32.mrf.mxu0
        %v1938 = vadd.f32 %v1777, %v1937
        %v1939 = vpop.f32.mrf.mxu0
        %v1940 = vadd.f32 %v1779, %v1939
        %1941 = vmatprep.mubr.f32.mxu0 %v445
        %1942 = vmatmul.mubr.f32.gmra.mxu0 %v444
        %v1943 = vpop.f32.mrf.mxu0
        %v1944 = vadd.f32 %v1783, %v1943
        %v1945 = vpop.f32.mrf.mxu0
        %v1946 = vadd.f32 %v1785, %v1945
        %1947 = vmatprep.mubr.f32.mxu0 %v453
        %1948 = vmatmul.mubr.f32.gmra.mxu0 %v452
        %v1949 = vpop.f32.mrf.mxu0
        %v1950 = vadd.f32 %v1789, %v1949
        %v1951 = vpop.f32.mrf.mxu0
        %v1952 = vadd.f32 %v1791, %v1951
        %1953 = vmatprep.mubr.f32.mxu0 %v461
        %1954 = vmatmul.mubr.f32.gmra.mxu0 %v460
        %v1955 = vpop.f32.mrf.mxu0
        %v1956 = vadd.f32 %v1795, %v1955
        %v1957 = vpop.f32.mrf.mxu0
        %v1958 = vadd.f32 %v1797, %v1957
        %1959 = vmatprep.mubr.f32.mxu0 %v469
        %1960 = vmatmul.mubr.f32.gmra.mxu0 %v468
        %v1961 = vpop.f32.mrf.mxu0
        %v1962 = vadd.f32 %v1801, %v1961
        %v1963 = vpop.f32.mrf.mxu0
        %v1964 = vadd.f32 %v1803, %v1963
        %1965 = vmatprep.mubr.f32.mxu0 %v477
        %1966 = vmatmul.mubr.f32.gmra.mxu0 %v476
        %v1967 = vpop.f32.mrf.mxu0
        %v1968 = vadd.f32 %v1807, %v1967
        %v1969 = vpop.f32.mrf.mxu0
        %v1970 = vadd.f32 %v1809, %v1969
        %1971 = vmatprep.mubr.f32.mxu0 %v485
        %1972 = vmatmul.mubr.f32.gmra.mxu0 %v484
        %v1973 = vpop.f32.mrf.mxu0
        %v1974 = vadd.f32 %v1813, %v1973
        %v1975 = vpop.f32.mrf.mxu0
        %v1976 = vadd.f32 %v1815, %v1975
        %1977 = vmatprep.mubr.f32.mxu0 %v493
        %1978 = vmatmul.mubr.f32.gmra.mxu0 %v492
        %v1979 = vpop.f32.mrf.mxu0
        %v1980 = vadd.f32 %v1819, %v1979
        %v1981 = vpop.f32.mrf.mxu0
        %v1982 = vadd.f32 %v1821, %v1981
        %1983 = vmatprep.mubr.f32.mxu0 %v501
        %1984 = vmatmul.mubr.f32.gmra.mxu0 %v500
        %v1985 = vpop.f32.mrf.mxu0
        %v1986 = vadd.f32 %v1825, %v1985
        %v1987 = vpop.f32.mrf.mxu0
        %v1988 = vadd.f32 %v1827, %v1987
        %1989 = vmatprep.mubr.f32.mxu0 %v509
        %1990 = vmatmul.mubr.f32.gmra.mxu0 %v508
        %v1991 = vpop.f32.mrf.mxu0
        %v1992 = vadd.f32 %v1831, %v1991
        %v1993 = vpop.f32.mrf.mxu0
        %v1994 = vadd.f32 %v1833, %v1993
        %1995 = vmatprep.mubr.f32.mxu0 %v517
        %1996 = vmatmul.mubr.f32.gmra.mxu0 %v516
        %v1997 = vpop.f32.mrf.mxu0
        %v1998 = vadd.f32 %v1837, %v1997
        %v1999 = vpop.f32.mrf.mxu0
        %v2000 = vadd.f32 %v1839, %v1999
        %2001 = vmatprep.mubr.f32.mxu0 %v525
        %2002 = vmatmul.mubr.f32.gmra.mxu0 %v524
        %v2003 = vpop.f32.mrf.mxu0
        %v2004 = vadd.f32 %v1843, %v2003
        %v2005 = vpop.f32.mrf.mxu0
        %v2006 = vadd.f32 %v1845, %v2005
        %2007 = vdwg.mxu0
        %2008 = vmatprep.subr.mxu0 %v849
        %2009 = vmatpush1.msra.mxu0 %v848
        %2010 = vmatprep.subr.mxu0 %v845
        %2011 = vmatpush1.msra.mxu0 %v844
        %2012 = vmatprep.subr.mxu0 %v841
        %2013 = vmatpush1.msra.mxu0 %v840
        %2014 = vmatprep.subr.mxu0 %v837
        %2015 = vmatpush1.msra.mxu0 %v836
        %2016 = vmatprep.subr.mxu0 %v833
        %2017 = vmatpush1.msra.mxu0 %v832
        %2018 = vmatprep.subr.mxu0 %v829
        %2019 = vmatpush1.msra.mxu0 %v828
        %2020 = vmatprep.subr.mxu0 %v825
        %2021 = vmatpush1.msra.mxu0 %v824
        %2022 = vmatprep.subr.mxu0 %v821
        %2023 = vmatpush1.msra.mxu0 %v820
        %2024 = vmatprep.subr.mxu0 %v817
        %2025 = vmatpush1.msra.mxu0 %v816
        %2026 = vmatprep.subr.mxu0 %v813
        %2027 = vmatpush1.msra.mxu0 %v812
        %2028 = vmatprep.subr.mxu0 %v809
        %2029 = vmatpush1.msra.mxu0 %v808
        %2030 = vmatprep.subr.mxu0 %v805
        %2031 = vmatpush1.msra.mxu0 %v804
        %2032 = vmatprep.subr.mxu0 %v801
        %2033 = vmatpush1.msra.mxu0 %v800
        %2034 = vmatprep.subr.mxu0 %v797
        %2035 = vmatpush1.msra.mxu0 %v796
        %2036 = vmatprep.subr.mxu0 %v793
        %2037 = vmatpush1.msra.mxu0 %v792
        %2038 = vmatprep.subr.mxu0 %v789
        %2039 = vmatpush1.msra.mxu0 %v788
        %2040 = vmatprep.subr.mxu0 %v913
        %2041 = vmatpush2.msra.mxu0 %v912
        %2042 = vmatprep.subr.mxu0 %v909
        %2043 = vmatpush2.msra.mxu0 %v908
        %2044 = vmatprep.subr.mxu0 %v905
        %2045 = vmatpush2.msra.mxu0 %v904
        %2046 = vmatprep.subr.mxu0 %v901
        %2047 = vmatpush2.msra.mxu0 %v900
        %2048 = vmatprep.subr.mxu0 %v897
        %2049 = vmatpush2.msra.mxu0 %v896
        %2050 = vmatprep.subr.mxu0 %v893
        %2051 = vmatpush2.msra.mxu0 %v892
        %2052 = vmatprep.subr.mxu0 %v889
        %2053 = vmatpush2.msra.mxu0 %v888
        %2054 = vmatprep.subr.mxu0 %v885
        %2055 = vmatpush2.msra.mxu0 %v884
        %2056 = vmatprep.subr.mxu0 %v881
        %2057 = vmatpush2.msra.mxu0 %v880
        %2058 = vmatprep.subr.mxu0 %v877
        %2059 = vmatpush2.msra.mxu0 %v876
        %2060 = vmatprep.subr.mxu0 %v873
        %2061 = vmatpush2.msra.mxu0 %v872
        %2062 = vmatprep.subr.mxu0 %v869
        %2063 = vmatpush2.msra.mxu0 %v868
        %2064 = vmatprep.subr.mxu0 %v865
        %2065 = vmatpush2.msra.mxu0 %v864
        %2066 = vmatprep.subr.mxu0 %v861
        %2067 = vmatpush2.msra.mxu0 %v860
        %2068 = vmatprep.subr.mxu0 %v857
        %2069 = vmatpush2.msra.mxu0 %v856
        %2070 = vmatprep.subr.mxu0 %v853
        %2071 = vmatpush2.msra.mxu0 %v852
        %2072 = vmatprep.mubr.f32.mxu0 %v407
        %2073 = vmatmul.mubr.f32.gmra.mxu0 %v406
        %v2074 = vpop.f32.mrf.mxu0
        %v2075 = vadd.f32 %v1914, %v2074
        %v2076 = vpop.f32.mrf.mxu0
        %v2077 = vadd.f32 %v1916, %v2076
        %2078 = vmatprep.mubr.f32.mxu0 %v415
        %2079 = vmatmul.mubr.f32.gmra.mxu0 %v414
        %v2080 = vpop.f32.mrf.mxu0
        %v2081 = vadd.f32 %v1920, %v2080
        %v2082 = vpop.f32.mrf.mxu0
        %v2083 = vadd.f32 %v1922, %v2082
        %2084 = vmatprep.mubr.f32.mxu0 %v423
        %2085 = vmatmul.mubr.f32.gmra.mxu0 %v422
        %v2086 = vpop.f32.mrf.mxu0
        %v2087 = vadd.f32 %v1926, %v2086
        %v2088 = vpop.f32.mrf.mxu0
        %v2089 = vadd.f32 %v1928, %v2088
        %2090 = vmatprep.mubr.f32.mxu0 %v431
        %2091 = vmatmul.mubr.f32.gmra.mxu0 %v430
        %v2092 = vpop.f32.mrf.mxu0
        %v2093 = vadd.f32 %v1932, %v2092
        %v2094 = vpop.f32.mrf.mxu0
        %v2095 = vadd.f32 %v1934, %v2094
        %2096 = vmatprep.mubr.f32.mxu0 %v439
        %2097 = vmatmul.mubr.f32.gmra.mxu0 %v438
        %v2098 = vpop.f32.mrf.mxu0
        %v2099 = vadd.f32 %v1938, %v2098
        %v2100 = vpop.f32.mrf.mxu0
        %v2101 = vadd.f32 %v1940, %v2100
        %2102 = vmatprep.mubr.f32.mxu0 %v447
        %2103 = vmatmul.mubr.f32.gmra.mxu0 %v446
        %v2104 = vpop.f32.mrf.mxu0
        %v2105 = vadd.f32 %v1944, %v2104
        %v2106 = vpop.f32.mrf.mxu0
        %v2107 = vadd.f32 %v1946, %v2106
        %2108 = vmatprep.mubr.f32.mxu0 %v455
        %2109 = vmatmul.mubr.f32.gmra.mxu0 %v454
        %v2110 = vpop.f32.mrf.mxu0
        %v2111 = vadd.f32 %v1950, %v2110
        %v2112 = vpop.f32.mrf.mxu0
        %v2113 = vadd.f32 %v1952, %v2112
        %2114 = vmatprep.mubr.f32.mxu0 %v463
        %2115 = vmatmul.mubr.f32.gmra.mxu0 %v462
        %v2116 = vpop.f32.mrf.mxu0
        %v2117 = vadd.f32 %v1956, %v2116
        %v2118 = vpop.f32.mrf.mxu0
        %v2119 = vadd.f32 %v1958, %v2118
        %2120 = vmatprep.mubr.f32.mxu0 %v471
        %2121 = vmatmul.mubr.f32.gmra.mxu0 %v470
        %v2122 = vpop.f32.mrf.mxu0
        %v2123 = vadd.f32 %v1962, %v2122
        %v2124 = vpop.f32.mrf.mxu0
        %v2125 = vadd.f32 %v1964, %v2124
        %2126 = vmatprep.mubr.f32.mxu0 %v479
        %2127 = vmatmul.mubr.f32.gmra.mxu0 %v478
        %v2128 = vpop.f32.mrf.mxu0
        %v2129 = vadd.f32 %v1968, %v2128
        %v2130 = vpop.f32.mrf.mxu0
        %v2131 = vadd.f32 %v1970, %v2130
        %2132 = vmatprep.mubr.f32.mxu0 %v487
        %2133 = vmatmul.mubr.f32.gmra.mxu0 %v486
        %v2134 = vpop.f32.mrf.mxu0
        %v2135 = vadd.f32 %v1974, %v2134
        %v2136 = vpop.f32.mrf.mxu0
        %v2137 = vadd.f32 %v1976, %v2136
        %2138 = vmatprep.mubr.f32.mxu0 %v495
        %2139 = vmatmul.mubr.f32.gmra.mxu0 %v494
        %v2140 = vpop.f32.mrf.mxu0
        %v2141 = vadd.f32 %v1980, %v2140
        %v2142 = vpop.f32.mrf.mxu0
        %v2143 = vadd.f32 %v1982, %v2142
        %2144 = vmatprep.mubr.f32.mxu0 %v503
        %2145 = vmatmul.mubr.f32.gmra.mxu0 %v502
        %v2146 = vpop.f32.mrf.mxu0
        %v2147 = vadd.f32 %v1986, %v2146
        %v2148 = vpop.f32.mrf.mxu0
        %v2149 = vadd.f32 %v1988, %v2148
        %2150 = vmatprep.mubr.f32.mxu0 %v511
        %2151 = vmatmul.mubr.f32.gmra.mxu0 %v510
        %v2152 = vpop.f32.mrf.mxu0
        %v2153 = vadd.f32 %v1992, %v2152
        %v2154 = vpop.f32.mrf.mxu0
        %v2155 = vadd.f32 %v1994, %v2154
        %2156 = vmatprep.mubr.f32.mxu0 %v519
        %2157 = vmatmul.mubr.f32.gmra.mxu0 %v518
        %v2158 = vpop.f32.mrf.mxu0
        %v2159 = vadd.f32 %v1998, %v2158
        %v2160 = vpop.f32.mrf.mxu0
        %v2161 = vadd.f32 %v2000, %v2160
        %2162 = vmatprep.mubr.f32.mxu0 %v527
        %2163 = vmatmul.mubr.f32.gmra.mxu0 %v526
        %v2164 = vpop.f32.mrf.mxu0
        %v2165 = vadd.f32 %v2004, %v2164
        %v2166 = vpop.f32.mrf.mxu0
        %v2167 = vadd.f32 %v2006, %v2166
        %2168 = vdwg.mxu0
        %2169 = vmatprep.subr.mxu0 %v977
        %2170 = vmatpush1.msra.mxu0 %v976
        %2171 = vmatprep.subr.mxu0 %v973
        %2172 = vmatpush1.msra.mxu0 %v972
        %2173 = vmatprep.subr.mxu0 %v969
        %2174 = vmatpush1.msra.mxu0 %v968
        %2175 = vmatprep.subr.mxu0 %v965
        %2176 = vmatpush1.msra.mxu0 %v964
        %2177 = vmatprep.subr.mxu0 %v961
        %2178 = vmatpush1.msra.mxu0 %v960
        %2179 = vmatprep.subr.mxu0 %v957
        %2180 = vmatpush1.msra.mxu0 %v956
        %2181 = vmatprep.subr.mxu0 %v953
        %2182 = vmatpush1.msra.mxu0 %v952
        %2183 = vmatprep.subr.mxu0 %v949
        %2184 = vmatpush1.msra.mxu0 %v948
        %2185 = vmatprep.subr.mxu0 %v945
        %2186 = vmatpush1.msra.mxu0 %v944
        %2187 = vmatprep.subr.mxu0 %v941
        %2188 = vmatpush1.msra.mxu0 %v940
        %2189 = vmatprep.subr.mxu0 %v937
        %2190 = vmatpush1.msra.mxu0 %v936
        %2191 = vmatprep.subr.mxu0 %v933
        %2192 = vmatpush1.msra.mxu0 %v932
        %2193 = vmatprep.subr.mxu0 %v929
        %2194 = vmatpush1.msra.mxu0 %v928
        %2195 = vmatprep.subr.mxu0 %v925
        %2196 = vmatpush1.msra.mxu0 %v924
        %2197 = vmatprep.subr.mxu0 %v921
        %2198 = vmatpush1.msra.mxu0 %v920
        %2199 = vmatprep.subr.mxu0 %v917
        %2200 = vmatpush1.msra.mxu0 %v916
        %2201 = vmatprep.subr.mxu0 %v1041
        %2202 = vmatpush2.msra.mxu0 %v1040
        %2203 = vmatprep.subr.mxu0 %v1037
        %2204 = vmatpush2.msra.mxu0 %v1036
        %2205 = vmatprep.subr.mxu0 %v1033
        %2206 = vmatpush2.msra.mxu0 %v1032
        %2207 = vmatprep.subr.mxu0 %v1029
        %2208 = vmatpush2.msra.mxu0 %v1028
        %2209 = vmatprep.subr.mxu0 %v1025
        %2210 = vmatpush2.msra.mxu0 %v1024
        %2211 = vmatprep.subr.mxu0 %v1021
        %2212 = vmatpush2.msra.mxu0 %v1020
        %2213 = vmatprep.subr.mxu0 %v1017
        %2214 = vmatpush2.msra.mxu0 %v1016
        %2215 = vmatprep.subr.mxu0 %v1013
        %2216 = vmatpush2.msra.mxu0 %v1012
        %2217 = vmatprep.subr.mxu0 %v1009
        %2218 = vmatpush2.msra.mxu0 %v1008
        %2219 = vmatprep.subr.mxu0 %v1005
        %2220 = vmatpush2.msra.mxu0 %v1004
        %2221 = vmatprep.subr.mxu0 %v1001
        %2222 = vmatpush2.msra.mxu0 %v1000
        %2223 = vmatprep.subr.mxu0 %v997
        %2224 = vmatpush2.msra.mxu0 %v996
        %2225 = vmatprep.subr.mxu0 %v993
        %2226 = vmatpush2.msra.mxu0 %v992
        %2227 = vmatprep.subr.mxu0 %v989
        %2228 = vmatpush2.msra.mxu0 %v988
        %2229 = vmatprep.subr.mxu0 %v985
        %2230 = vmatpush2.msra.mxu0 %v984
        %2231 = vmatprep.subr.mxu0 %v981
        %2232 = vmatpush2.msra.mxu0 %v980
        %2233 = vmatprep.mubr.f32.mxu0 %v409
        %2234 = vmatmul.mubr.f32.gmra.mxu0 %v408
        %v2235 = vpop.f32.mrf.mxu0
        %v2236 = vadd.f32 %v2075, %v2235
        %v2237 = vpop.f32.mrf.mxu0
        %v2238 = vadd.f32 %v2077, %v2237
        %2239 = vmatprep.mubr.f32.mxu0 %v417
        %2240 = vmatmul.mubr.f32.gmra.mxu0 %v416
        %v2241 = vpop.f32.mrf.mxu0
        %v2242 = vadd.f32 %v2081, %v2241
        %v2243 = vpop.f32.mrf.mxu0
        %v2244 = vadd.f32 %v2083, %v2243
        %2245 = vmatprep.mubr.f32.mxu0 %v425
        %2246 = vmatmul.mubr.f32.gmra.mxu0 %v424
        %v2247 = vpop.f32.mrf.mxu0
        %v2248 = vadd.f32 %v2087, %v2247
        %v2249 = vpop.f32.mrf.mxu0
        %v2250 = vadd.f32 %v2089, %v2249
        %2251 = vmatprep.mubr.f32.mxu0 %v433
        %2252 = vmatmul.mubr.f32.gmra.mxu0 %v432
        %v2253 = vpop.f32.mrf.mxu0
        %v2254 = vadd.f32 %v2093, %v2253
        %v2255 = vpop.f32.mrf.mxu0
        %v2256 = vadd.f32 %v2095, %v2255
        %2257 = vmatprep.mubr.f32.mxu0 %v441
        %2258 = vmatmul.mubr.f32.gmra.mxu0 %v440
        %v2259 = vpop.f32.mrf.mxu0
        %v2260 = vadd.f32 %v2099, %v2259
        %v2261 = vpop.f32.mrf.mxu0
        %v2262 = vadd.f32 %v2101, %v2261
        %2263 = vmatprep.mubr.f32.mxu0 %v449
        %2264 = vmatmul.mubr.f32.gmra.mxu0 %v448
        %v2265 = vpop.f32.mrf.mxu0
        %v2266 = vadd.f32 %v2105, %v2265
        %v2267 = vpop.f32.mrf.mxu0
        %v2268 = vadd.f32 %v2107, %v2267
        %2269 = vmatprep.mubr.f32.mxu0 %v457
        %2270 = vmatmul.mubr.f32.gmra.mxu0 %v456
        %v2271 = vpop.f32.mrf.mxu0
        %v2272 = vadd.f32 %v2111, %v2271
        %v2273 = vpop.f32.mrf.mxu0
        %v2274 = vadd.f32 %v2113, %v2273
        %2275 = vmatprep.mubr.f32.mxu0 %v465
        %2276 = vmatmul.mubr.f32.gmra.mxu0 %v464
        %v2277 = vpop.f32.mrf.mxu0
        %v2278 = vadd.f32 %v2117, %v2277
        %v2279 = vpop.f32.mrf.mxu0
        %v2280 = vadd.f32 %v2119, %v2279
        %2281 = vmatprep.mubr.f32.mxu0 %v473
        %2282 = vmatmul.mubr.f32.gmra.mxu0 %v472
        %v2283 = vpop.f32.mrf.mxu0
        %v2284 = vadd.f32 %v2123, %v2283
        %v2285 = vpop.f32.mrf.mxu0
        %v2286 = vadd.f32 %v2125, %v2285
        %2287 = vmatprep.mubr.f32.mxu0 %v481
        %2288 = vmatmul.mubr.f32.gmra.mxu0 %v480
        %v2289 = vpop.f32.mrf.mxu0
        %v2290 = vadd.f32 %v2129, %v2289
        %v2291 = vpop.f32.mrf.mxu0
        %v2292 = vadd.f32 %v2131, %v2291
        %2293 = vmatprep.mubr.f32.mxu0 %v489
        %2294 = vmatmul.mubr.f32.gmra.mxu0 %v488
        %v2295 = vpop.f32.mrf.mxu0
        %v2296 = vadd.f32 %v2135, %v2295
        %v2297 = vpop.f32.mrf.mxu0
        %v2298 = vadd.f32 %v2137, %v2297
        %2299 = vmatprep.mubr.f32.mxu0 %v497
        %2300 = vmatmul.mubr.f32.gmra.mxu0 %v496
        %v2301 = vpop.f32.mrf.mxu0
        %v2302 = vadd.f32 %v2141, %v2301
        %v2303 = vpop.f32.mrf.mxu0
        %v2304 = vadd.f32 %v2143, %v2303
        %2305 = vmatprep.mubr.f32.mxu0 %v505
        %2306 = vmatmul.mubr.f32.gmra.mxu0 %v504
        %v2307 = vpop.f32.mrf.mxu0
        %v2308 = vadd.f32 %v2147, %v2307
        %v2309 = vpop.f32.mrf.mxu0
        %v2310 = vadd.f32 %v2149, %v2309
        %2311 = vmatprep.mubr.f32.mxu0 %v513
        %2312 = vmatmul.mubr.f32.gmra.mxu0 %v512
        %v2313 = vpop.f32.mrf.mxu0
        %v2314 = vadd.f32 %v2153, %v2313
        %v2315 = vpop.f32.mrf.mxu0
        %v2316 = vadd.f32 %v2155, %v2315
        %2317 = vmatprep.mubr.f32.mxu0 %v521
        %2318 = vmatmul.mubr.f32.gmra.mxu0 %v520
        %v2319 = vpop.f32.mrf.mxu0
        %v2320 = vadd.f32 %v2159, %v2319
        %v2321 = vpop.f32.mrf.mxu0
        %v2322 = vadd.f32 %v2161, %v2321
        %2323 = vmatprep.mubr.f32.mxu0 %v529
        %2324 = vmatmul.mubr.f32.gmra.mxu0 %v528
        %v2325 = vpop.f32.mrf.mxu0
        %v2326 = vadd.f32 %v2165, %v2325
        %v2327 = vpop.f32.mrf.mxu0
        %v2328 = vadd.f32 %v2167, %v2327
        %2329 = vdwg.mxu0
        %v2330 = vadd.f32 %v338, %v1592
        %v2331 = vadd.f32 %v339, %v1594
        %v2332 = vadd.f32 %v340, %v2236
        %v2333 = vadd.f32 %v341, %v2238
        %v2334 = vadd.f32 %v342, %v1598
        %v2335 = vadd.f32 %v343, %v1600
        %v2336 = vadd.f32 %v344, %v2242
        %v2337 = vadd.f32 %v345, %v2244
        %v2338 = vadd.f32 %v346, %v1604
        %v2339 = vadd.f32 %v347, %v1606
        %v2340 = vadd.f32 %v348, %v2248
        %v2341 = vadd.f32 %v349, %v2250
        %v2342 = vadd.f32 %v350, %v1610
        %v2343 = vadd.f32 %v351, %v1612
        %v2344 = vadd.f32 %v352, %v2254
        %v2345 = vadd.f32 %v353, %v2256
        %v2346 = vadd.f32 %v354, %v1616
        %v2347 = vadd.f32 %v355, %v1618
        %v2348 = vadd.f32 %v356, %v2260
        %v2349 = vadd.f32 %v357, %v2262
        %v2350 = vadd.f32 %v358, %v1622
        %v2351 = vadd.f32 %v359, %v1624
        %v2352 = vadd.f32 %v360, %v2266
        %v2353 = vadd.f32 %v361, %v2268
        %v2354 = vadd.f32 %v362, %v1628
        %v2355 = vadd.f32 %v363, %v1630
        %v2356 = vadd.f32 %v364, %v2272
        %v2357 = vadd.f32 %v365, %v2274
        %v2358 = vadd.f32 %v366, %v1634
        %v2359 = vadd.f32 %v367, %v1636
        %v2360 = vadd.f32 %v368, %v2278
        %v2361 = vadd.f32 %v369, %v2280
        %v2362 = vadd.f32 %v370, %v1640
        %v2363 = vadd.f32 %v371, %v1642
        %v2364 = vadd.f32 %v372, %v2284
        %v2365 = vadd.f32 %v373, %v2286
        %v2366 = vadd.f32 %v374, %v1646
        %v2367 = vadd.f32 %v375, %v1648
        %v2368 = vadd.f32 %v376, %v2290
        %v2369 = vadd.f32 %v377, %v2292
        %v2370 = vadd.f32 %v378, %v1652
        %v2371 = vadd.f32 %v379, %v1654
        %v2372 = vadd.f32 %v380, %v2296
        %v2373 = vadd.f32 %v381, %v2298
        %v2374 = vadd.f32 %v382, %v1658
        %v2375 = vadd.f32 %v383, %v1660
        %v2376 = vadd.f32 %v384, %v2302
        %v2377 = vadd.f32 %v385, %v2304
        %v2378 = vadd.f32 %v386, %v1664
        %v2379 = vadd.f32 %v387, %v1666
        %v2380 = vadd.f32 %v388, %v2308
        %v2381 = vadd.f32 %v389, %v2310
        %v2382 = vadd.f32 %v390, %v1670
        %v2383 = vadd.f32 %v391, %v1672
        %v2384 = vadd.f32 %v392, %v2314
        %v2385 = vadd.f32 %v393, %v2316
        %v2386 = vadd.f32 %v394, %v1676
        %v2387 = vadd.f32 %v395, %v1678
        %v2388 = vadd.f32 %v396, %v2320
        %v2389 = vadd.f32 %v397, %v2322
        %v2390 = vadd.f32 %v398, %v1682
        %v2391 = vadd.f32 %v399, %v1684
        %v2392 = vadd.f32 %v400, %v2326
        %v2393 = vadd.f32 %v401, %v2328
        %2394 = vst [vmem:[%s262] sm:$0xff] %v2330
        %2395 = vst [vmem:[%s262 + $0x8] sm:$0xff] %v2331
        %2396 = vst [vmem:[%s262 + $0x10] sm:$0xff] %v2332
        %2397 = vst [vmem:[%s262 + $0x18] sm:$0xff] %v2333
        %2398 = vst [vmem:[%s262 + $0x20] sm:$0xff] %v2334
        %2399 = vst [vmem:[%s262 + $0x28] sm:$0xff] %v2335
        %2400 = vst [vmem:[%s262 + $0x30] sm:$0xff] %v2336
        %2401 = vst [vmem:[%s262 + $0x38] sm:$0xff] %v2337
        %2402 = vst [vmem:[%s262 + $0x40] sm:$0xff] %v2338
        %2403 = vst [vmem:[%s262 + $0x48] sm:$0xff] %v2339
        %2404 = vst [vmem:[%s262 + $0x50] sm:$0xff] %v2340
        %2405 = vst [vmem:[%s262 + $0x58] sm:$0xff] %v2341
        %2406 = vst [vmem:[%s262 + $0x60] sm:$0xff] %v2342
        %2407 = vst [vmem:[%s262 + $0x68] sm:$0xff] %v2343
        %2408 = vst [vmem:[%s262 + $0x70] sm:$0xff] %v2344
        %2409 = vst [vmem:[%s262 + $0x78] sm:$0xff] %v2345
        %2410 = vst [vmem:[%s262 + $0x80] sm:$0xff] %v2346
        %2411 = vst [vmem:[%s262 + $0x88] sm:$0xff] %v2347
        %2412 = vst [vmem:[%s262 + $0x90] sm:$0xff] %v2348
        %2413 = vst [vmem:[%s262 + $0x98] sm:$0xff] %v2349
        %2414 = vst [vmem:[%s262 + $0xa0] sm:$0xff] %v2350
        %2415 = vst [vmem:[%s262 + $0xa8] sm:$0xff] %v2351
        %2416 = vst [vmem:[%s262 + $0xb0] sm:$0xff] %v2352
        %2417 = vst [vmem:[%s262 + $0xb8] sm:$0xff] %v2353
        %2418 = vst [vmem:[%s262 + $0xc0] sm:$0xff] %v2354
        %2419 = vst [vmem:[%s262 + $0xc8] sm:$0xff] %v2355
        %2420 = vst [vmem:[%s262 + $0xd0] sm:$0xff] %v2356
        %2421 = vst [vmem:[%s262 + $0xd8] sm:$0xff] %v2357
        %2422 = vst [vmem:[%s262 + $0xe0] sm:$0xff] %v2358
        %2423 = vst [vmem:[%s262 + $0xe8] sm:$0xff] %v2359
        %2424 = vst [vmem:[%s262 + $0xf0] sm:$0xff] %v2360
        %2425 = vst [vmem:[%s262 + $0xf8] sm:$0xff] %v2361
        %2426 = vst [vmem:[%s262 + $0x100] sm:$0xff] %v2362
        %2427 = vst [vmem:[%s262 + $0x108] sm:$0xff] %v2363
        %2428 = vst [vmem:[%s262 + $0x110] sm:$0xff] %v2364
        %2429 = vst [vmem:[%s262 + $0x118] sm:$0xff] %v2365
        %2430 = vst [vmem:[%s262 + $0x120] sm:$0xff] %v2366
        %2431 = vst [vmem:[%s262 + $0x128] sm:$0xff] %v2367
        %2432 = vst [vmem:[%s262 + $0x130] sm:$0xff] %v2368
        %2433 = vst [vmem:[%s262 + $0x138] sm:$0xff] %v2369
        %2434 = vst [vmem:[%s262 + $0x140] sm:$0xff] %v2370
        %2435 = vst [vmem:[%s262 + $0x148] sm:$0xff] %v2371
        %2436 = vst [vmem:[%s262 + $0x150] sm:$0xff] %v2372
        %2437 = vst [vmem:[%s262 + $0x158] sm:$0xff] %v2373
        %2438 = vst [vmem:[%s262 + $0x160] sm:$0xff] %v2374
        %2439 = vst [vmem:[%s262 + $0x168] sm:$0xff] %v2375
        %2440 = vst [vmem:[%s262 + $0x170] sm:$0xff] %v2376
        %2441 = vst [vmem:[%s262 + $0x178] sm:$0xff] %v2377
        %2442 = vst [vmem:[%s262 + $0x180] sm:$0xff] %v2378
        %2443 = vst [vmem:[%s262 + $0x188] sm:$0xff] %v2379
        %2444 = vst [vmem:[%s262 + $0x190] sm:$0xff] %v2380
        %2445 = vst [vmem:[%s262 + $0x198] sm:$0xff] %v2381
        %2446 = vst [vmem:[%s262 + $0x1a0] sm:$0xff] %v2382
        %2447 = vst [vmem:[%s262 + $0x1a8] sm:$0xff] %v2383
        %2448 = vst [vmem:[%s262 + $0x1b0] sm:$0xff] %v2384
        %2449 = vst [vmem:[%s262 + $0x1b8] sm:$0xff] %v2385
        %2450 = vst [vmem:[%s262 + $0x1c0] sm:$0xff] %v2386
        %2451 = vst [vmem:[%s262 + $0x1c8] sm:$0xff] %v2387
        %2452 = vst [vmem:[%s262 + $0x1d0] sm:$0xff] %v2388
        %2453 = vst [vmem:[%s262 + $0x1d8] sm:$0xff] %v2389
        %2454 = vst [vmem:[%s262 + $0x1e0] sm:$0xff] %v2390
        %2455 = vst [vmem:[%s262 + $0x1e8] sm:$0xff] %v2391
        %2456 = vst [vmem:[%s262 + $0x1f0] sm:$0xff] %v2392
        %2457 = vst [vmem:[%s262 + $0x1f8] sm:$0xff] %v2393
        // Predicated region
        $region49: #{_forward.1} parent=31 // pred_check
          %p2458 = pneg %p270
        $region50: #{_forward.1} parent=31 // pred_check_branch
          %2460 = sbr.rel (%p2458) target = $region52
        $region51: #{_forward.1} parent=31 // pred_region
          %v2461 = vld [vmem:[%s262] sm:$0xff]
          %v2462 = vld [vmem:[%s262 + $0x8] sm:$0xff]
          %v2463 = vld [vmem:[%s262 + $0x10] sm:$0xff]
          %v2464 = vld [vmem:[%s262 + $0x18] sm:$0xff]
          %v2465 = vld [vmem:[%s262 + $0x20] sm:$0xff]
          %v2466 = vld [vmem:[%s262 + $0x28] sm:$0xff]
          %v2467 = vld [vmem:[%s262 + $0x30] sm:$0xff]
          %v2468 = vld [vmem:[%s262 + $0x38] sm:$0xff]
          %v2469 = vld [vmem:[%s262 + $0x40] sm:$0xff]
          %v2470 = vld [vmem:[%s262 + $0x48] sm:$0xff]
          %v2471 = vld [vmem:[%s262 + $0x50] sm:$0xff]
          %v2472 = vld [vmem:[%s262 + $0x58] sm:$0xff]
          %v2473 = vld [vmem:[%s262 + $0x60] sm:$0xff]
          %v2474 = vld [vmem:[%s262 + $0x68] sm:$0xff]
          %v2475 = vld [vmem:[%s262 + $0x70] sm:$0xff]
          %v2476 = vld [vmem:[%s262 + $0x78] sm:$0xff]
          %v2477 = vld [vmem:[%s262 + $0x80] sm:$0xff]
          %v2478 = vld [vmem:[%s262 + $0x88] sm:$0xff]
          %v2479 = vld [vmem:[%s262 + $0x90] sm:$0xff]
          %v2480 = vld [vmem:[%s262 + $0x98] sm:$0xff]
          %v2481 = vld [vmem:[%s262 + $0xa0] sm:$0xff]
          %v2482 = vld [vmem:[%s262 + $0xa8] sm:$0xff]
          %v2483 = vld [vmem:[%s262 + $0xb0] sm:$0xff]
          %v2484 = vld [vmem:[%s262 + $0xb8] sm:$0xff]
          %v2485 = vld [vmem:[%s262 + $0xc0] sm:$0xff]
          %v2486 = vld [vmem:[%s262 + $0xc8] sm:$0xff]
          %v2487 = vld [vmem:[%s262 + $0xd0] sm:$0xff]
          %v2488 = vld [vmem:[%s262 + $0xd8] sm:$0xff]
          %v2489 = vld [vmem:[%s262 + $0xe0] sm:$0xff]
          %v2490 = vld [vmem:[%s262 + $0xe8] sm:$0xff]
          %v2491 = vld [vmem:[%s262 + $0xf0] sm:$0xff]
          %v2492 = vld [vmem:[%s262 + $0xf8] sm:$0xff]
          %v2493 = vld [vmem:[%s262 + $0x100] sm:$0xff]
          %v2494 = vld [vmem:[%s262 + $0x108] sm:$0xff]
          %v2495 = vld [vmem:[%s262 + $0x110] sm:$0xff]
          %v2496 = vld [vmem:[%s262 + $0x118] sm:$0xff]
          %v2497 = vld [vmem:[%s262 + $0x120] sm:$0xff]
          %v2498 = vld [vmem:[%s262 + $0x128] sm:$0xff]
          %v2499 = vld [vmem:[%s262 + $0x130] sm:$0xff]
          %v2500 = vld [vmem:[%s262 + $0x138] sm:$0xff]
          %v2501 = vld [vmem:[%s262 + $0x140] sm:$0xff]
          %v2502 = vld [vmem:[%s262 + $0x148] sm:$0xff]
          %v2503 = vld [vmem:[%s262 + $0x150] sm:$0xff]
          %v2504 = vld [vmem:[%s262 + $0x158] sm:$0xff]
          %v2505 = vld [vmem:[%s262 + $0x160] sm:$0xff]
          %v2506 = vld [vmem:[%s262 + $0x168] sm:$0xff]
          %v2507 = vld [vmem:[%s262 + $0x170] sm:$0xff]
          %v2508 = vld [vmem:[%s262 + $0x178] sm:$0xff]
          %v2509 = vld [vmem:[%s262 + $0x180] sm:$0xff]
          %v2510 = vld [vmem:[%s262 + $0x188] sm:$0xff]
          %v2511 = vld [vmem:[%s262 + $0x190] sm:$0xff]
          %v2512 = vld [vmem:[%s262 + $0x198] sm:$0xff]
          %v2513 = vld [vmem:[%s262 + $0x1a0] sm:$0xff]
          %v2514 = vld [vmem:[%s262 + $0x1a8] sm:$0xff]
          %v2515 = vld [vmem:[%s262 + $0x1b0] sm:$0xff]
          %v2516 = vld [vmem:[%s262 + $0x1b8] sm:$0xff]
          %v2517 = vld [vmem:[%s262 + $0x1c0] sm:$0xff]
          %v2518 = vld [vmem:[%s262 + $0x1c8] sm:$0xff]
          %v2519 = vld [vmem:[%s262 + $0x1d0] sm:$0xff]
          %v2520 = vld [vmem:[%s262 + $0x1d8] sm:$0xff]
          %v2521 = vld [vmem:[%s262 + $0x1e0] sm:$0xff]
          %v2522 = vld [vmem:[%s262 + $0x1e8] sm:$0xff]
          %v2523 = vld [vmem:[%s262 + $0x1f0] sm:$0xff]
          %v2524 = vld [vmem:[%s262 + $0x1f8] sm:$0xff]
          %v2525 = vld [vmem:[#allocation7] sm:$0xf]
          %v2527 = vlaneseq
          %v2528 = vshrl.u32 %v2527, 7
          %v2529 = vsub.s32 0, %v2528
          %v2530 = vrot.slane %v2525, %v2529
          %v2531 = vlaneseq
          %v2532 = vshrl.u32 %v2531, 7
          %v2533 = vsub.s32 1, %v2532
          %v2534 = vrot.slane %v2525, %v2533
          %v2535 = vlaneseq
          %v2536 = vshrl.u32 %v2535, 7
          %v2537 = vsub.s32 2, %v2536
          %v2538 = vrot.slane %v2525, %v2537
          %v2539 = vlaneseq
          %v2540 = vshrl.u32 %v2539, 7
          %v2541 = vsub.s32 3, %v2540
          %v2542 = vrot.slane %v2525, %v2541
          %v2547 = vadd.f32 %v2461, %v2530
          %v2548 = vadd.f32 %v2462, %v2534
          %v2549 = vadd.f32 %v2463, %v2538
          %v2550 = vadd.f32 %v2464, %v2542
          %v2551 = vadd.f32 %v2465, %v2530
          %v2552 = vadd.f32 %v2466, %v2534
          %v2553 = vadd.f32 %v2467, %v2538
          %v2554 = vadd.f32 %v2468, %v2542
          %v2555 = vadd.f32 %v2469, %v2530
          %v2556 = vadd.f32 %v2470, %v2534
          %v2557 = vadd.f32 %v2471, %v2538
          %v2558 = vadd.f32 %v2472, %v2542
          %v2559 = vadd.f32 %v2473, %v2530
          %v2560 = vadd.f32 %v2474, %v2534
          %v2561 = vadd.f32 %v2475, %v2538
          %v2562 = vadd.f32 %v2476, %v2542
          %v2563 = vadd.f32 %v2477, %v2530
          %v2564 = vadd.f32 %v2478, %v2534
          %v2565 = vadd.f32 %v2479, %v2538
          %v2566 = vadd.f32 %v2480, %v2542
          %v2567 = vadd.f32 %v2481, %v2530
          %v2568 = vadd.f32 %v2482, %v2534
          %v2569 = vadd.f32 %v2483, %v2538
          %v2570 = vadd.f32 %v2484, %v2542
          %v2571 = vadd.f32 %v2485, %v2530
          %v2572 = vadd.f32 %v2486, %v2534
          %v2573 = vadd.f32 %v2487, %v2538
          %v2574 = vadd.f32 %v2488, %v2542
          %v2575 = vadd.f32 %v2489, %v2530
          %v2576 = vadd.f32 %v2490, %v2534
          %v2577 = vadd.f32 %v2491, %v2538
          %v2578 = vadd.f32 %v2492, %v2542
          %v2579 = vadd.f32 %v2493, %v2530
          %v2580 = vadd.f32 %v2494, %v2534
          %v2581 = vadd.f32 %v2495, %v2538
          %v2582 = vadd.f32 %v2496, %v2542
          %v2583 = vadd.f32 %v2497, %v2530
          %v2584 = vadd.f32 %v2498, %v2534
          %v2585 = vadd.f32 %v2499, %v2538
          %v2586 = vadd.f32 %v2500, %v2542
          %v2587 = vadd.f32 %v2501, %v2530
          %v2588 = vadd.f32 %v2502, %v2534
          %v2589 = vadd.f32 %v2503, %v2538
          %v2590 = vadd.f32 %v2504, %v2542
          %v2591 = vadd.f32 %v2505, %v2530
          %v2592 = vadd.f32 %v2506, %v2534
          %v2593 = vadd.f32 %v2507, %v2538
          %v2594 = vadd.f32 %v2508, %v2542
          %v2595 = vadd.f32 %v2509, %v2530
          %v2596 = vadd.f32 %v2510, %v2534
          %v2597 = vadd.f32 %v2511, %v2538
          %v2598 = vadd.f32 %v2512, %v2542
          %v2599 = vadd.f32 %v2513, %v2530
          %v2600 = vadd.f32 %v2514, %v2534
          %v2601 = vadd.f32 %v2515, %v2538
          %v2602 = vadd.f32 %v2516, %v2542
          %v2603 = vadd.f32 %v2517, %v2530
          %v2604 = vadd.f32 %v2518, %v2534
          %v2605 = vadd.f32 %v2519, %v2538
          %v2606 = vadd.f32 %v2520, %v2542
          %v2607 = vadd.f32 %v2521, %v2530
          %v2608 = vadd.f32 %v2522, %v2534
          %v2609 = vadd.f32 %v2523, %v2538
          %v2610 = vadd.f32 %v2524, %v2542
          %2611 = vst [vmem:[%s262] sm:$0xff] %v2547
          %2612 = vst [vmem:[%s262 + $0x8] sm:$0xff] %v2548
          %2613 = vst [vmem:[%s262 + $0x10] sm:$0xff] %v2549
          %2614 = vst [vmem:[%s262 + $0x18] sm:$0xff] %v2550
          %2615 = vst [vmem:[%s262 + $0x20] sm:$0xff] %v2551
          %2616 = vst [vmem:[%s262 + $0x28] sm:$0xff] %v2552
          %2617 = vst [vmem:[%s262 + $0x30] sm:$0xff] %v2553
          %2618 = vst [vmem:[%s262 + $0x38] sm:$0xff] %v2554
          %2619 = vst [vmem:[%s262 + $0x40] sm:$0xff] %v2555
          %2620 = vst [vmem:[%s262 + $0x48] sm:$0xff] %v2556
          %2621 = vst [vmem:[%s262 + $0x50] sm:$0xff] %v2557
          %2622 = vst [vmem:[%s262 + $0x58] sm:$0xff] %v2558
          %2623 = vst [vmem:[%s262 + $0x60] sm:$0xff] %v2559
          %2624 = vst [vmem:[%s262 + $0x68] sm:$0xff] %v2560
          %2625 = vst [vmem:[%s262 + $0x70] sm:$0xff] %v2561
          %2626 = vst [vmem:[%s262 + $0x78] sm:$0xff] %v2562
          %2627 = vst [vmem:[%s262 + $0x80] sm:$0xff] %v2563
          %2628 = vst [vmem:[%s262 + $0x88] sm:$0xff] %v2564
          %2629 = vst [vmem:[%s262 + $0x90] sm:$0xff] %v2565
          %2630 = vst [vmem:[%s262 + $0x98] sm:$0xff] %v2566
          %2631 = vst [vmem:[%s262 + $0xa0] sm:$0xff] %v2567
          %2632 = vst [vmem:[%s262 + $0xa8] sm:$0xff] %v2568
          %2633 = vst [vmem:[%s262 + $0xb0] sm:$0xff] %v2569
          %2634 = vst [vmem:[%s262 + $0xb8] sm:$0xff] %v2570
          %2635 = vst [vmem:[%s262 + $0xc0] sm:$0xff] %v2571
          %2636 = vst [vmem:[%s262 + $0xc8] sm:$0xff] %v2572
          %2637 = vst [vmem:[%s262 + $0xd0] sm:$0xff] %v2573
          %2638 = vst [vmem:[%s262 + $0xd8] sm:$0xff] %v2574
          %2639 = vst [vmem:[%s262 + $0xe0] sm:$0xff] %v2575
          %2640 = vst [vmem:[%s262 + $0xe8] sm:$0xff] %v2576
          %2641 = vst [vmem:[%s262 + $0xf0] sm:$0xff] %v2577
          %2642 = vst [vmem:[%s262 + $0xf8] sm:$0xff] %v2578
          %2643 = vst [vmem:[%s262 + $0x100] sm:$0xff] %v2579
          %2644 = vst [vmem:[%s262 + $0x108] sm:$0xff] %v2580
          %2645 = vst [vmem:[%s262 + $0x110] sm:$0xff] %v2581
          %2646 = vst [vmem:[%s262 + $0x118] sm:$0xff] %v2582
          %2647 = vst [vmem:[%s262 + $0x120] sm:$0xff] %v2583
          %2648 = vst [vmem:[%s262 + $0x128] sm:$0xff] %v2584
          %2649 = vst [vmem:[%s262 + $0x130] sm:$0xff] %v2585
          %2650 = vst [vmem:[%s262 + $0x138] sm:$0xff] %v2586
          %2651 = vst [vmem:[%s262 + $0x140] sm:$0xff] %v2587
          %2652 = vst [vmem:[%s262 + $0x148] sm:$0xff] %v2588
          %2653 = vst [vmem:[%s262 + $0x150] sm:$0xff] %v2589
          %2654 = vst [vmem:[%s262 + $0x158] sm:$0xff] %v2590
          %2655 = vst [vmem:[%s262 + $0x160] sm:$0xff] %v2591
          %2656 = vst [vmem:[%s262 + $0x168] sm:$0xff] %v2592
          %2657 = vst [vmem:[%s262 + $0x170] sm:$0xff] %v2593
          %2658 = vst [vmem:[%s262 + $0x178] sm:$0xff] %v2594
          %2659 = vst [vmem:[%s262 + $0x180] sm:$0xff] %v2595
          %2660 = vst [vmem:[%s262 + $0x188] sm:$0xff] %v2596
          %2661 = vst [vmem:[%s262 + $0x190] sm:$0xff] %v2597
          %2662 = vst [vmem:[%s262 + $0x198] sm:$0xff] %v2598
          %2663 = vst [vmem:[%s262 + $0x1a0] sm:$0xff] %v2599
          %2664 = vst [vmem:[%s262 + $0x1a8] sm:$0xff] %v2600
          %2665 = vst [vmem:[%s262 + $0x1b0] sm:$0xff] %v2601
          %2666 = vst [vmem:[%s262 + $0x1b8] sm:$0xff] %v2602
          %2667 = vst [vmem:[%s262 + $0x1c0] sm:$0xff] %v2603
          %2668 = vst [vmem:[%s262 + $0x1c8] sm:$0xff] %v2604
          %2669 = vst [vmem:[%s262 + $0x1d0] sm:$0xff] %v2605
          %2670 = vst [vmem:[%s262 + $0x1d8] sm:$0xff] %v2606
          %2671 = vst [vmem:[%s262 + $0x1e0] sm:$0xff] %v2607
          %2672 = vst [vmem:[%s262 + $0x1e8] sm:$0xff] %v2608
          %2673 = vst [vmem:[%s262 + $0x1f0] sm:$0xff] %v2609
          %2674 = vst [vmem:[%s262 + $0x1f8] sm:$0xff] %v2610
        $region52: #{_forward.1} parent=31 // pred_fallthru
          _
        %s2675 = sand.u32 %s132, 1
        %s2676 = scalar_lea.sflag [#allocation4], %s2675
        %s2677 = sand.u32 %s132, 1
        %s2678 = smul.addr %s2677, 512
        %s2679 = scalar_lea.vmem [#allocation8], %s2678
        // Predicated region
        $region53: #{_forward.1} parent=31 // pred_check
          %p2680 = pneg %p142
        $region54: #{_forward.1} parent=31 // pred_check_branch
          %2682 = sbr.rel (%p2680) target = $region56
        $region55: #{_forward.1} parent=31 // pred_region
          %s2683 = smul.u32 16, %s26
          %s2684 = smul.u32 4, %s27
          %s2686 = ssub.s32 8192, 8192
          %2687 = vsyncadd %s2676, %s2686
          %s2688 = smul.addr %s2683, 4
          %s2689 = sadd.s32 %s2684, %s2688
          %s2690 = smul.addr %s2689, 128
          %s2691 = scalar_lea.hbm %s3, %s2690
          %s2692 = sshll.u32 %s2679, 4
          %s2693 = int_to_ptr.vmem [resolvable:$true] %s2692
          %2698 = dma.vmem_to_hbm [thread:$0]  %s2693, 8192, %s2691, %s2676, 512, 512, 32
        $region56: #{_forward.1} parent=31 // pred_fallthru
          _
      $region32: #{_forward.1} parent=5 // pred_fallthru
        _
      %p2699 = scmp.le.s32.totalorder 2, %s16
      // Predicated region
      $region57: #{_forward.1} parent=5 // pred_check
        %p2700 = pneg %p2699
      $region58: #{_forward.1} parent=5 // pred_check_branch
        %2702 = sbr.rel (%p2700) target = $region60
      $region59: #{_forward.1} parent=5 // pred_region
        %s2703 = ssub.s32 %s16, 2
        // Predicated region
        $region61: #{_forward.1} parent=59 // pred_check
          %p2704 = pneg %p148
        $region62: #{_forward.1} parent=59 // pred_check_branch
          %2706 = sbr.rel (%p2704) target = $region64
        $region63: #{_forward.1} parent=59 // pred_region
          %s2707 = sand.u32 %s133, 1
          %s2708 = scalar_lea.sflag [#allocation4], %s2707
          %s2709 = sand.u32 %s133, 1
          %s2710 = smul.addr %s2709, 512
          %s2711 = scalar_lea.vmem [#allocation8], %s2710
          %2712 = dma.done %s2708, 8192
        $region64: #{_forward.1} parent=59 // pred_fallthru
          _
      $region60: #{_forward.1} parent=5 // pred_fallthru
        _
    $region6: #{_forward.1} parent=1 // loop_footer
      %s20 = sadd.s32 1, %s16
    $region7: #{_forward.1} parent=1 // loop_footer_branch
      %15 = sbr.rel target = $region3
    $region8: #{_forward.1} parent=1 // loop_exit
      _
    %2713 = vsyncpa [#allocation3], 1
    %s2714 = scalar_lea.sflag [#allocation3], 1
    %2715 = vsyncpa %s2714, 1
    %2716 = vsyncpa [#allocation6], 1
    %2717 = vsyncpa [#allocation4], 1
    %s2718 = scalar_lea.sflag [#allocation4], 1
    %2719 = vsyncpa %s2718, 1

</llo_original>
